<compile_context>
chip_gen: v5e
topology: v5e:2x2
jax: 0.10.0
libtpu: 0.0.40
codegen_flags: <defaults>
</compile_context>

<pallas_src>
import functools

import jax
import jax.numpy as jnp
from jax.experimental import pallas as pl
from jax.experimental.pallas import tpu as pltpu


# ---------------------------------------------------------------------------
# Fused Pallas kernel: num_layers x LSTM + FC head (single invocation, no grid)
# ---------------------------------------------------------------------------

def _lstm_stack_kernel(*refs, num_layers, T, Bp, H):
    """refs layout (padded shapes):
      inputs : x (T*Bp, Ep) bf16,
               [w_ih_l (in_l, Gp) bf16, w_hh_l (H, Gp) bf16, b_l (1, Gp) f32] * L,
               w_fc (H, Cp) bf16, b_fc (1, Cp) f32
      outputs: out (Bp, Cp) f32
      scratch: seq (T*Bp, H) bf16   -- inter-layer hidden sequence, VMEM resident
    """
    n_in = 1 + 3 * num_layers + 2
    x_ref = refs[0]
    w_fc_ref = refs[1 + 3 * num_layers]
    b_fc_ref = refs[2 + 3 * num_layers]
    out_ref = refs[n_in]
    seq_ref = refs[n_in + 1]

    h_bf = jnp.zeros((Bp, H), jnp.bfloat16)

    for layer in range(num_layers):
        w_ih = refs[1 + 3 * layer][...]   # (in_l, Gp) bf16
        w_hh = refs[2 + 3 * layer][...]   # (H,    Gp) bf16
        b = refs[3 + 3 * layer][...]      # (1,    Gp) f32

        # Layer input: original slab for layer 0, previous layer's hidden seq after.
        x_all = x_ref[...] if layer == 0 else seq_ref[...]        # (T*Bp, in_l) bf16

        # Hoisted input projection for all timesteps: one bf16 MXU matmul, f32 acc,
        # bias folded in.  Gate pre-activations stay f32.
        xg = jnp.dot(x_all, w_ih, preferred_element_type=jnp.float32) + b  # (T*Bp, Gp)

        h_bf = jnp.zeros((Bp, H), jnp.bfloat16)
        c = jnp.zeros((Bp, H), jnp.float32)
        last_layer = layer == num_layers - 1

        # Serial recurrence: only h @ W_hh (bf16 MXU) + f32 gate math on the critical
        # path.  T is small and static -> fully unrolled for scheduler visibility.
        for t in range(T):
            gates = xg[t * Bp:(t + 1) * Bp, :] + jnp.dot(
                h_bf, w_hh, preferred_element_type=jnp.float32)   # (Bp, Gp) f32
            # Gates are contiguous [i|f|g|o], each H lanes wide (lane slices, no pad).
            i_g = jax.nn.sigmoid(gates[:, 0 * H:1 * H])
            f_g = jax.nn.sigmoid(gates[:, 1 * H:2 * H])
            g_g = jnp.tanh(gates[:, 2 * H:3 * H])
            o_g = jax.nn.sigmoid(gates[:, 3 * H:4 * H])
            c = f_g * c + i_g * g_g
            h_bf = (o_g * jnp.tanh(c)).astype(jnp.bfloat16)
            if not last_layer:
                seq_ref[pl.ds(t * Bp, Bp), :] = h_bf   # next layer's input

    # Fused classifier head on the final hidden state (lane-dense Cp output).
    out_ref[...] = (
        jnp.dot(h_bf, w_fc_ref[...], preferred_element_type=jnp.float32)
        + b_fc_ref[...]
    )


# ---------------------------------------------------------------------------
# Padding helpers (exact: all padding is zeros)
# ---------------------------------------------------------------------------

def _round_up(x, m):
    return ((x + m - 1) // m) * m


def _full_spec(shape):
    return pl.BlockSpec(shape, lambda s=len(shape): (0,) * s)


# ---------------------------------------------------------------------------
# Forward wrapper
# ---------------------------------------------------------------------------

@functools.partial(jax.jit, static_argnames=("num_layers",))
def lstm_classifier_forward(data_batch, params, num_layers):
    """Forward pass matching LSTMClassifier.forward.

    data_batch: (B, T, E) float32 (batch_first, like PyTorch)
    returns   : (B, num_classes) float32
    """
    B, T, E = data_batch.shape
    H = params["lstm_l0"]["w_hh_t"].shape[0]
    C = params["fc1"]["w_t"].shape[1]

    Bp = _round_up(B, 8)          # sublane alignment
    Ep = _round_up(E, 128)        # lane alignment of layer-0 input slab
    G = 4 * H
    Gp = _round_up(G, 128)        # gates kept contiguous; tail-pad only
    Cp = _round_up(C, 128)        # lane-dense output store

    # Time-major, padded, flattened to 2-D (T*Bp rows), bf16 for the MXU.
    x = jnp.transpose(data_batch, (1, 0, 2))                       # (T, B, E)
    x = jnp.pad(x, ((0, 0), (0, Bp - B), (0, Ep - E)))             # (T, Bp, Ep)
    x = x.reshape(T * Bp, Ep).astype(jnp.bfloat16)

    inputs = [x]
    in_specs = [_full_spec(x.shape)]

    for layer in range(num_layers):
        p = params[f"lstm_l{layer}"]
        in_dim = E if layer == 0 else H
        in_dim_p = Ep if layer == 0 else H       # hidden dim is NOT padded
        w_ih = jnp.pad(p["w_ih_t"],
                       ((0, in_dim_p - in_dim), (0, Gp - G))).astype(jnp.bfloat16)
        w_hh = jnp.pad(p["w_hh_t"], ((0, 0), (0, Gp - G))).astype(jnp.bfloat16)
        b = jnp.pad(p["b"], ((0, 0), (0, Gp - G)))                 # f32 bias
        inputs += [w_ih, w_hh, b]
        in_specs += [_full_spec(w_ih.shape), _full_spec(w_hh.shape),
                     _full_spec(b.shape)]

    fc = params["fc1"]
    w_fc = jnp.pad(fc["w_t"], ((0, 0), (0, Cp - C))).astype(jnp.bfloat16)
    b_fc = jnp.pad(fc["b"], ((0, 0), (0, Cp - C)))                 # f32 bias
    inputs += [w_fc, b_fc]
    in_specs += [_full_spec(w_fc.shape), _full_spec(b_fc.shape)]

    kernel = functools.partial(_lstm_stack_kernel,
                               num_layers=num_layers, T=T, Bp=Bp, H=H)

    out_p = pl.pallas_call(
        kernel,
        out_shape=jax.ShapeDtypeStruct((Bp, Cp), jnp.float32),
        in_specs=in_specs,
        out_specs=pl.BlockSpec((Bp, Cp), lambda: (0, 0)),
        scratch_shapes=[pltpu.VMEM((T * Bp, H), jnp.bfloat16)],
        compiler_params=pltpu.CompilerParams(vmem_limit_bytes=16 << 20),
    )(*inputs)

    return out_p[:B, :C]


# ---------------------------------------------------------------------------
# Deterministic parameter construction (PyTorch-style U(-1/sqrt(H), 1/sqrt(H)))
# ---------------------------------------------------------------------------

def init_params(key, embedding_len, num_classes, hidden_size, num_layers):
    params = {}
    bound = 1.0 / jnp.sqrt(hidden_size)
    for layer in range(num_layers):
        in_size = embedding_len if layer == 0 else hidden_size
        key, k1, k2, k3, k4 = jax.random.split(key, 5)
        w_ih = jax.random.uniform(k1, (4 * hidden_size, in_size),
                                  jnp.float32, -bound, bound)
        w_hh = jax.random.uniform(k2, (4 * hidden_size, hidden_size),
                                  jnp.float32, -bound, bound)
        b_ih = jax.random.uniform(k3, (4 * hidden_size,), jnp.float32, -bound, bound)
        b_hh = jax.random.uniform(k4, (4 * hidden_size,), jnp.float32, -bound, bound)
        params[f"lstm_l{layer}"] = {
            "w_ih_t": w_ih.T,                       # (in, 4H), gate order i,f,g,o
            "w_hh_t": w_hh.T,                       # (H, 4H)
            "b": (b_ih + b_hh)[None, :],            # (1, 4H)
        }
    key, k1, k2 = jax.random.split(key, 3)
    fc_bound = 1.0 / jnp.sqrt(hidden_size)
    w_fc = jax.random.uniform(k1, (num_classes, hidden_size),
                              jnp.float32, -fc_bound, fc_bound)
    b_fc = jax.random.uniform(k2, (num_classes,), jnp.float32, -fc_bound, fc_bound)
    params["fc1"] = {"w_t": w_fc.T, "b": b_fc[None, :]}
    return params


# ---------------------------------------------------------------------------
# Pure-JAX reference (for correctness check only)
#   matmul_dtype=bf16 mirrors the kernel's bf16-MXU / f32-accumulate numerics.
# ---------------------------------------------------------------------------

def reference_forward(data_batch, params, num_layers, hidden_size,
                      matmul_dtype=jnp.float32):
    H = hidden_size
    x = data_batch.astype(jnp.float32)  # (B, T, E)
    B = x.shape[0]
    for layer in range(num_layers):
        p = params[f"lstm_l{layer}"]
        w_ih = p["w_ih_t"].astype(matmul_dtype)
        w_hh = p["w_hh_t"].astype(matmul_dtype)
        b = p["b"]
        h = jnp.zeros((B, H), jnp.float32)
        c = jnp.zeros((B, H), jnp.float32)

        def step(carry, x_t, w_ih=w_ih, w_hh=w_hh, b=b):
            h, c = carry
            gates = (jnp.dot(x_t.astype(matmul_dtype), w_ih,
                             preferred_element_type=jnp.float32)
                     + jnp.dot(h.astype(matmul_dtype), w_hh,
                               preferred_element_type=jnp.float32)
                     + b)
            i_g = jax.nn.sigmoid(gates[:, :H])
            f_g = jax.nn.sigmoid(gates[:, H:2 * H])
            g_g = jnp.tanh(gates[:, 2 * H:3 * H])
            o_g = jax.nn.sigmoid(gates[:, 3 * H:])
            c_new = f_g * c + i_g * g_g
            h_new = o_g * jnp.tanh(c_new)
            return (h_new, c_new), h_new

        (_, _), ys = jax.lax.scan(step, (h, c), jnp.transpose(x, (1, 0, 2)))
        x = jnp.transpose(ys, (1, 0, 2))
    fc = params["fc1"]
    h_last = x[:, -1, :]
    return (jnp.dot(h_last.astype(matmul_dtype), fc["w_t"].astype(matmul_dtype),
                    preferred_element_type=jnp.float32) + fc["b"])


# ---------------------------------------------------------------------------
# Main
# ---------------------------------------------------------------------------

if __name__ == "__main__":
    # Small shapes consistent with the module's forward.
    B, T = 2, 8
    embedding_len = 16
    hidden_size = 32
    num_layers = 3
    num_classes = 4

    key = jax.random.PRNGKey(0)
    key, pkey, xkey = jax.random.split(key, 3)

    params = init_params(pkey, embedding_len, num_classes, hidden_size, num_layers)
    data_batch = jax.random.normal(xkey, (B, T, embedding_len), jnp.float32)

    out = lstm_classifier_forward(data_batch, params, num_layers)
    out = jax.block_until_ready(out)
    assert out.shape == (B, num_classes)

    # Tight check against a reference that mirrors the kernel's bf16-matmul numerics.
    ref_bf16 = reference_forward(data_batch, params, num_layers, hidden_size,
                                 matmul_dtype=jnp.bfloat16)
    assert jnp.allclose(out, ref_bf16, atol=2e-3, rtol=2e-3), \
        "Pallas output mismatch vs bf16-matmul reference"

    # Loose sanity check against the full-f32 module semantics (bf16 MXU noise only).
    ref_f32 = reference_forward(data_batch, params, num_layers, hidden_size)
    assert jnp.allclose(out, ref_f32, atol=1e-1, rtol=1e-1), \
        "Pallas output deviates grossly from f32 reference"

    print("KERNEL_OK")
</pallas_src>

<mosaic_0001>
module attributes {stable_mosaic.version = 11 : i64} {
  func.func @_lstm_stack_kernel(%arg0: memref<64x128xbf16, #tpu.memory_space<vmem>>, %arg1: memref<128x128xbf16, #tpu.memory_space<vmem>>, %arg2: memref<32x128xbf16, #tpu.memory_space<vmem>>, %arg3: memref<1x128xf32, #tpu.memory_space<vmem>>, %arg4: memref<32x128xbf16, #tpu.memory_space<vmem>>, %arg5: memref<32x128xbf16, #tpu.memory_space<vmem>>, %arg6: memref<1x128xf32, #tpu.memory_space<vmem>>, %arg7: memref<32x128xbf16, #tpu.memory_space<vmem>>, %arg8: memref<32x128xbf16, #tpu.memory_space<vmem>>, %arg9: memref<1x128xf32, #tpu.memory_space<vmem>>, %arg10: memref<32x128xbf16, #tpu.memory_space<vmem>>, %arg11: memref<1x128xf32, #tpu.memory_space<vmem>>, %arg12: memref<8x128xf32, #tpu.memory_space<vmem>>, %arg13: memref<64x32xbf16, #tpu.memory_space<vmem>>) attributes {dimension_semantics = [], scalar_prefetch = 0 : i64, scratch_operands = 1 : i64, tpu.core_type = #tpu.core_type<tc>} {
    %c0 = arith.constant 0 : index
    %c0_0 = arith.constant 0 : index
    %0 = vector.load %arg1[%c0, %c0_0] : memref<128x128xbf16, #tpu.memory_space<vmem>>, vector<128x128xbf16>
    %c0_1 = arith.constant 0 : index
    %c0_2 = arith.constant 0 : index
    %1 = vector.load %arg2[%c0_1, %c0_2] : memref<32x128xbf16, #tpu.memory_space<vmem>>, vector<32x128xbf16>
    %c0_3 = arith.constant 0 : index
    %c0_4 = arith.constant 0 : index
    %2 = vector.load %arg3[%c0_3, %c0_4] : memref<1x128xf32, #tpu.memory_space<vmem>>, vector<1x128xf32>
    %c0_5 = arith.constant 0 : index
    %c0_6 = arith.constant 0 : index
    %3 = vector.load %arg0[%c0_5, %c0_6] : memref<64x128xbf16, #tpu.memory_space<vmem>>, vector<64x128xbf16>
    %cst = arith.constant dense<0.000000e+00> : vector<64x128xf32>
    %4 = tpu.matmul %3, %0, %cst {dimension_numbers = #tpu.dot_dimension_numbers<[1], [0], [0], [1], [0, 0, 1, 1], [], []>} : vector<64x128xbf16>, vector<128x128xbf16>, vector<64x128xf32> -> vector<64x128xf32>
    %5 = vector.broadcast %2 : vector<1x128xf32> to vector<64x128xf32>
    %6 = arith.addf %4, %5 : vector<64x128xf32>
    %cst_7 = arith.constant 0.000000e+00 : bf16
    %7 = vector.broadcast %cst_7 : bf16 to vector<8x32xbf16>
    %cst_8 = arith.constant 0.000000e+00 : f32
    %8 = vector.broadcast %cst_8 : f32 to vector<8x32xf32>
    %9 = vector.extract_strided_slice %6 {offsets = [0, 0], sizes = [8, 128], strides = [1, 1]} : vector<64x128xf32> to vector<8x128xf32>
    %cst_9 = arith.constant dense<0.000000e+00> : vector<8x128xf32>
    %10 = tpu.matmul %7, %1, %cst_9 {dimension_numbers = #tpu.dot_dimension_numbers<[1], [0], [0], [1], [0, 0, 1, 1], [], []>} : vector<8x32xbf16>, vector<32x128xbf16>, vector<8x128xf32> -> vector<8x128xf32>
    %11 = arith.addf %9, %10 : vector<8x128xf32>
    %12 = vector.extract_strided_slice %11 {offsets = [0, 0], sizes = [8, 32], strides = [1, 1]} : vector<8x128xf32> to vector<8x32xf32>
    %13 = arith.negf %12 : vector<8x32xf32>
    %14 = math.exp %13 : vector<8x32xf32>
    %cst_10 = arith.constant 1.000000e+00 : f32
    %15 = vector.broadcast %cst_10 : f32 to vector<8x32xf32>
    %16 = arith.addf %15, %14 : vector<8x32xf32>
    %17 = arith.divf %15, %16 : vector<8x32xf32>
    %18 = vector.extract_strided_slice %11 {offsets = [0, 32], sizes = [8, 32], strides = [1, 1]} : vector<8x128xf32> to vector<8x32xf32>
    %19 = arith.negf %18 : vector<8x32xf32>
    %20 = math.exp %19 : vector<8x32xf32>
    %cst_11 = arith.constant 1.000000e+00 : f32
    %21 = vector.broadcast %cst_11 : f32 to vector<8x32xf32>
    %22 = arith.addf %21, %20 : vector<8x32xf32>
    %23 = arith.divf %21, %22 : vector<8x32xf32>
    %24 = vector.extract_strided_slice %11 {offsets = [0, 64], sizes = [8, 32], strides = [1, 1]} : vector<8x128xf32> to vector<8x32xf32>
    %25 = math.tanh %24 : vector<8x32xf32>
    %26 = vector.extract_strided_slice %11 {offsets = [0, 96], sizes = [8, 32], strides = [1, 1]} : vector<8x128xf32> to vector<8x32xf32>
    %27 = arith.negf %26 : vector<8x32xf32>
    %28 = math.exp %27 : vector<8x32xf32>
    %cst_12 = arith.constant 1.000000e+00 : f32
    %29 = vector.broadcast %cst_12 : f32 to vector<8x32xf32>
    %30 = arith.addf %29, %28 : vector<8x32xf32>
    %31 = arith.divf %29, %30 : vector<8x32xf32>
    %32 = arith.mulf %23, %8 : vector<8x32xf32>
    %33 = arith.mulf %17, %25 : vector<8x32xf32>
    %34 = arith.addf %32, %33 : vector<8x32xf32>
    %35 = math.tanh %34 : vector<8x32xf32>
    %36 = arith.mulf %31, %35 : vector<8x32xf32>
    %37 = arith.truncf %36 : vector<8x32xf32> to vector<8x32xbf16>
    %c0_13 = arith.constant 0 : index
    %c0_14 = arith.constant 0 : index
    %38 = vector.load %arg13[%c0_13, %c0_14] : memref<64x32xbf16, #tpu.memory_space<vmem>>, vector<8x32xbf16>
    tpu.vector_store %arg13[%c0_13, %c0_14], %37 {strides = array<i32>} : memref<64x32xbf16, #tpu.memory_space<vmem>>, vector<8x32xbf16>,
    %39 = vector.extract_strided_slice %6 {offsets = [8, 0], sizes = [8, 128], strides = [1, 1]} : vector<64x128xf32> to vector<8x128xf32>
    %cst_15 = arith.constant dense<0.000000e+00> : vector<8x128xf32>
    %40 = tpu.matmul %37, %1, %cst_15 {dimension_numbers = #tpu.dot_dimension_numbers<[1], [0], [0], [1], [0, 0, 1, 1], [], []>} : vector<8x32xbf16>, vector<32x128xbf16>, vector<8x128xf32> -> vector<8x128xf32>
    %41 = arith.addf %39, %40 : vector<8x128xf32>
    %42 = vector.extract_strided_slice %41 {offsets = [0, 0], sizes = [8, 32], strides = [1, 1]} : vector<8x128xf32> to vector<8x32xf32>
    %43 = arith.negf %42 : vector<8x32xf32>
    %44 = math.exp %43 : vector<8x32xf32>
    %cst_16 = arith.constant 1.000000e+00 : f32
    %45 = vector.broadcast %cst_16 : f32 to vector<8x32xf32>
    %46 = arith.addf %45, %44 : vector<8x32xf32>
    %47 = arith.divf %45, %46 : vector<8x32xf32>
    %48 = vector.extract_strided_slice %41 {offsets = [0, 32], sizes = [8, 32], strides = [1, 1]} : vector<8x128xf32> to vector<8x32xf32>
    %49 = arith.negf %48 : vector<8x32xf32>
    %50 = math.exp %49 : vector<8x32xf32>
    %cst_17 = arith.constant 1.000000e+00 : f32
    %51 = vector.broadcast %cst_17 : f32 to vector<8x32xf32>
    %52 = arith.addf %51, %50 : vector<8x32xf32>
    %53 = arith.divf %51, %52 : vector<8x32xf32>
    %54 = vector.extract_strided_slice %41 {offsets = [0, 64], sizes = [8, 32], strides = [1, 1]} : vector<8x128xf32> to vector<8x32xf32>
    %55 = math.tanh %54 : vector<8x32xf32>
    %56 = vector.extract_strided_slice %41 {offsets = [0, 96], sizes = [8, 32], strides = [1, 1]} : vector<8x128xf32> to vector<8x32xf32>
    %57 = arith.negf %56 : vector<8x32xf32>
    %58 = math.exp %57 : vector<8x32xf32>
    %cst_18 = arith.constant 1.000000e+00 : f32
    %59 = vector.broadcast %cst_18 : f32 to vector<8x32xf32>
    %60 = arith.addf %59, %58 : vector<8x32xf32>
    %61 = arith.divf %59, %60 : vector<8x32xf32>
    %62 = arith.mulf %53, %34 : vector<8x32xf32>
    %63 = arith.mulf %47, %55 : vector<8x32xf32>
    %64 = arith.addf %62, %63 : vector<8x32xf32>
    %65 = math.tanh %64 : vector<8x32xf32>
    %66 = arith.mulf %61, %65 : vector<8x32xf32>
    %67 = arith.truncf %66 : vector<8x32xf32> to vector<8x32xbf16>
    %c8 = arith.constant 8 : index
    %c0_19 = arith.constant 0 : index
    %68 = vector.load %arg13[%c8, %c0_19] : memref<64x32xbf16, #tpu.memory_space<vmem>>, vector<8x32xbf16>
    tpu.vector_store %arg13[%c8, %c0_19], %67 {strides = array<i32>} : memref<64x32xbf16, #tpu.memory_space<vmem>>, vector<8x32xbf16>,
    %69 = vector.extract_strided_slice %6 {offsets = [16, 0], sizes = [8, 128], strides = [1, 1]} : vector<64x128xf32> to vector<8x128xf32>
    %cst_20 = arith.constant dense<0.000000e+00> : vector<8x128xf32>
    %70 = tpu.matmul %67, %1, %cst_20 {dimension_numbers = #tpu.dot_dimension_numbers<[1], [0], [0], [1], [0, 0, 1, 1], [], []>} : vector<8x32xbf16>, vector<32x128xbf16>, vector<8x128xf32> -> vector<8x128xf32>
    %71 = arith.addf %69, %70 : vector<8x128xf32>
    %72 = vector.extract_strided_slice %71 {offsets = [0, 0], sizes = [8, 32], strides = [1, 1]} : vector<8x128xf32> to vector<8x32xf32>
    %73 = arith.negf %72 : vector<8x32xf32>
    %74 = math.exp %73 : vector<8x32xf32>
    %cst_21 = arith.constant 1.000000e+00 : f32
    %75 = vector.broadcast %cst_21 : f32 to vector<8x32xf32>
    %76 = arith.addf %75, %74 : vector<8x32xf32>
    %77 = arith.divf %75, %76 : vector<8x32xf32>
    %78 = vector.extract_strided_slice %71 {offsets = [0, 32], sizes = [8, 32], strides = [1, 1]} : vector<8x128xf32> to vector<8x32xf32>
    %79 = arith.negf %78 : vector<8x32xf32>
    %80 = math.exp %79 : vector<8x32xf32>
    %cst_22 = arith.constant 1.000000e+00 : f32
    %81 = vector.broadcast %cst_22 : f32 to vector<8x32xf32>
    %82 = arith.addf %81, %80 : vector<8x32xf32>
    %83 = arith.divf %81, %82 : vector<8x32xf32>
    %84 = vector.extract_strided_slice %71 {offsets = [0, 64], sizes = [8, 32], strides = [1, 1]} : vector<8x128xf32> to vector<8x32xf32>
    %85 = math.tanh %84 : vector<8x32xf32>
    %86 = vector.extract_strided_slice %71 {offsets = [0, 96], sizes = [8, 32], strides = [1, 1]} : vector<8x128xf32> to vector<8x32xf32>
    %87 = arith.negf %86 : vector<8x32xf32>
    %88 = math.exp %87 : vector<8x32xf32>
    %cst_23 = arith.constant 1.000000e+00 : f32
    %89 = vector.broadcast %cst_23 : f32 to vector<8x32xf32>
    %90 = arith.addf %89, %88 : vector<8x32xf32>
    %91 = arith.divf %89, %90 : vector<8x32xf32>
    %92 = arith.mulf %83, %64 : vector<8x32xf32>
    %93 = arith.mulf %77, %85 : vector<8x32xf32>
    %94 = arith.addf %92, %93 : vector<8x32xf32>
    %95 = math.tanh %94 : vector<8x32xf32>
    %96 = arith.mulf %91, %95 : vector<8x32xf32>
    %97 = arith.truncf %96 : vector<8x32xf32> to vector<8x32xbf16>
    %c16 = arith.constant 16 : index
    %c0_24 = arith.constant 0 : index
    %98 = vector.load %arg13[%c16, %c0_24] : memref<64x32xbf16, #tpu.memory_space<vmem>>, vector<8x32xbf16>
    tpu.vector_store %arg13[%c16, %c0_24], %97 {strides = array<i32>} : memref<64x32xbf16, #tpu.memory_space<vmem>>, vector<8x32xbf16>,
    %99 = vector.extract_strided_slice %6 {offsets = [24, 0], sizes = [8, 128], strides = [1, 1]} : vector<64x128xf32> to vector<8x128xf32>
    %cst_25 = arith.constant dense<0.000000e+00> : vector<8x128xf32>
    %100 = tpu.matmul %97, %1, %cst_25 {dimension_numbers = #tpu.dot_dimension_numbers<[1], [0], [0], [1], [0, 0, 1, 1], [], []>} : vector<8x32xbf16>, vector<32x128xbf16>, vector<8x128xf32> -> vector<8x128xf32>
    %101 = arith.addf %99, %100 : vector<8x128xf32>
    %102 = vector.extract_strided_slice %101 {offsets = [0, 0], sizes = [8, 32], strides = [1, 1]} : vector<8x128xf32> to vector<8x32xf32>
    %103 = arith.negf %102 : vector<8x32xf32>
    %104 = math.exp %103 : vector<8x32xf32>
    %cst_26 = arith.constant 1.000000e+00 : f32
    %105 = vector.broadcast %cst_26 : f32 to vector<8x32xf32>
    %106 = arith.addf %105, %104 : vector<8x32xf32>
    %107 = arith.divf %105, %106 : vector<8x32xf32>
    %108 = vector.extract_strided_slice %101 {offsets = [0, 32], sizes = [8, 32], strides = [1, 1]} : vector<8x128xf32> to vector<8x32xf32>
    %109 = arith.negf %108 : vector<8x32xf32>
    %110 = math.exp %109 : vector<8x32xf32>
    %cst_27 = arith.constant 1.000000e+00 : f32
    %111 = vector.broadcast %cst_27 : f32 to vector<8x32xf32>
    %112 = arith.addf %111, %110 : vector<8x32xf32>
    %113 = arith.divf %111, %112 : vector<8x32xf32>
    %114 = vector.extract_strided_slice %101 {offsets = [0, 64], sizes = [8, 32], strides = [1, 1]} : vector<8x128xf32> to vector<8x32xf32>
    %115 = math.tanh %114 : vector<8x32xf32>
    %116 = vector.extract_strided_slice %101 {offsets = [0, 96], sizes = [8, 32], strides = [1, 1]} : vector<8x128xf32> to vector<8x32xf32>
    %117 = arith.negf %116 : vector<8x32xf32>
    %118 = math.exp %117 : vector<8x32xf32>
    %cst_28 = arith.constant 1.000000e+00 : f32
    %119 = vector.broadcast %cst_28 : f32 to vector<8x32xf32>
    %120 = arith.addf %119, %118 : vector<8x32xf32>
    %121 = arith.divf %119, %120 : vector<8x32xf32>
    %122 = arith.mulf %113, %94 : vector<8x32xf32>
    %123 = arith.mulf %107, %115 : vector<8x32xf32>
    %124 = arith.addf %122, %123 : vector<8x32xf32>
    %125 = math.tanh %124 : vector<8x32xf32>
    %126 = arith.mulf %121, %125 : vector<8x32xf32>
    %127 = arith.truncf %126 : vector<8x32xf32> to vector<8x32xbf16>
    %c24 = arith.constant 24 : index
    %c0_29 = arith.constant 0 : index
    %128 = vector.load %arg13[%c24, %c0_29] : memref<64x32xbf16, #tpu.memory_space<vmem>>, vector<8x32xbf16>
    tpu.vector_store %arg13[%c24, %c0_29], %127 {strides = array<i32>} : memref<64x32xbf16, #tpu.memory_space<vmem>>, vector<8x32xbf16>,
    %129 = vector.extract_strided_slice %6 {offsets = [32, 0], sizes = [8, 128], strides = [1, 1]} : vector<64x128xf32> to vector<8x128xf32>
    %cst_30 = arith.constant dense<0.000000e+00> : vector<8x128xf32>
    %130 = tpu.matmul %127, %1, %cst_30 {dimension_numbers = #tpu.dot_dimension_numbers<[1], [0], [0], [1], [0, 0, 1, 1], [], []>} : vector<8x32xbf16>, vector<32x128xbf16>, vector<8x128xf32> -> vector<8x128xf32>
    %131 = arith.addf %129, %130 : vector<8x128xf32>
    %132 = vector.extract_strided_slice %131 {offsets = [0, 0], sizes = [8, 32], strides = [1, 1]} : vector<8x128xf32> to vector<8x32xf32>
    %133 = arith.negf %132 : vector<8x32xf32>
    %134 = math.exp %133 : vector<8x32xf32>
    %cst_31 = arith.constant 1.000000e+00 : f32
    %135 = vector.broadcast %cst_31 : f32 to vector<8x32xf32>
    %136 = arith.addf %135, %134 : vector<8x32xf32>
    %137 = arith.divf %135, %136 : vector<8x32xf32>
    %138 = vector.extract_strided_slice %131 {offsets = [0, 32], sizes = [8, 32], strides = [1, 1]} : vector<8x128xf32> to vector<8x32xf32>
    %139 = arith.negf %138 : vector<8x32xf32>
    %140 = math.exp %139 : vector<8x32xf32>
    %cst_32 = arith.constant 1.000000e+00 : f32
    %141 = vector.broadcast %cst_32 : f32 to vector<8x32xf32>
    %142 = arith.addf %141, %140 : vector<8x32xf32>
    %143 = arith.divf %141, %142 : vector<8x32xf32>
    %144 = vector.extract_strided_slice %131 {offsets = [0, 64], sizes = [8, 32], strides = [1, 1]} : vector<8x128xf32> to vector<8x32xf32>
    %145 = math.tanh %144 : vector<8x32xf32>
    %146 = vector.extract_strided_slice %131 {offsets = [0, 96], sizes = [8, 32], strides = [1, 1]} : vector<8x128xf32> to vector<8x32xf32>
    %147 = arith.negf %146 : vector<8x32xf32>
    %148 = math.exp %147 : vector<8x32xf32>
    %cst_33 = arith.constant 1.000000e+00 : f32
    %149 = vector.broadcast %cst_33 : f32 to vector<8x32xf32>
    %150 = arith.addf %149, %148 : vector<8x32xf32>
    %151 = arith.divf %149, %150 : vector<8x32xf32>
    %152 = arith.mulf %143, %124 : vector<8x32xf32>
    %153 = arith.mulf %137, %145 : vector<8x32xf32>
    %154 = arith.addf %152, %153 : vector<8x32xf32>
    %155 = math.tanh %154 : vector<8x32xf32>
    %156 = arith.mulf %151, %155 : vector<8x32xf32>
    %157 = arith.truncf %156 : vector<8x32xf32> to vector<8x32xbf16>
    %c32 = arith.constant 32 : index
    %c0_34 = arith.constant 0 : index
    %158 = vector.load %arg13[%c32, %c0_34] : memref<64x32xbf16, #tpu.memory_space<vmem>>, vector<8x32xbf16>
    tpu.vector_store %arg13[%c32, %c0_34], %157 {strides = array<i32>} : memref<64x32xbf16, #tpu.memory_space<vmem>>, vector<8x32xbf16>,
    %159 = vector.extract_strided_slice %6 {offsets = [40, 0], sizes = [8, 128], strides = [1, 1]} : vector<64x128xf32> to vector<8x128xf32>
    %cst_35 = arith.constant dense<0.000000e+00> : vector<8x128xf32>
    %160 = tpu.matmul %157, %1, %cst_35 {dimension_numbers = #tpu.dot_dimension_numbers<[1], [0], [0], [1], [0, 0, 1, 1], [], []>} : vector<8x32xbf16>, vector<32x128xbf16>, vector<8x128xf32> -> vector<8x128xf32>
    %161 = arith.addf %159, %160 : vector<8x128xf32>
    %162 = vector.extract_strided_slice %161 {offsets = [0, 0], sizes = [8, 32], strides = [1, 1]} : vector<8x128xf32> to vector<8x32xf32>
    %163 = arith.negf %162 : vector<8x32xf32>
    %164 = math.exp %163 : vector<8x32xf32>
    %cst_36 = arith.constant 1.000000e+00 : f32
    %165 = vector.broadcast %cst_36 : f32 to vector<8x32xf32>
    %166 = arith.addf %165, %164 : vector<8x32xf32>
    %167 = arith.divf %165, %166 : vector<8x32xf32>
    %168 = vector.extract_strided_slice %161 {offsets = [0, 32], sizes = [8, 32], strides = [1, 1]} : vector<8x128xf32> to vector<8x32xf32>
    %169 = arith.negf %168 : vector<8x32xf32>
    %170 = math.exp %169 : vector<8x32xf32>
    %cst_37 = arith.constant 1.000000e+00 : f32
    %171 = vector.broadcast %cst_37 : f32 to vector<8x32xf32>
    %172 = arith.addf %171, %170 : vector<8x32xf32>
    %173 = arith.divf %171, %172 : vector<8x32xf32>
    %174 = vector.extract_strided_slice %161 {offsets = [0, 64], sizes = [8, 32], strides = [1, 1]} : vector<8x128xf32> to vector<8x32xf32>
    %175 = math.tanh %174 : vector<8x32xf32>
    %176 = vector.extract_strided_slice %161 {offsets = [0, 96], sizes = [8, 32], strides = [1, 1]} : vector<8x128xf32> to vector<8x32xf32>
    %177 = arith.negf %176 : vector<8x32xf32>
    %178 = math.exp %177 : vector<8x32xf32>
    %cst_38 = arith.constant 1.000000e+00 : f32
    %179 = vector.broadcast %cst_38 : f32 to vector<8x32xf32>
    %180 = arith.addf %179, %178 : vector<8x32xf32>
    %181 = arith.divf %179, %180 : vector<8x32xf32>
    %182 = arith.mulf %173, %154 : vector<8x32xf32>
    %183 = arith.mulf %167, %175 : vector<8x32xf32>
    %184 = arith.addf %182, %183 : vector<8x32xf32>
    %185 = math.tanh %184 : vector<8x32xf32>
    %186 = arith.mulf %181, %185 : vector<8x32xf32>
    %187 = arith.truncf %186 : vector<8x32xf32> to vector<8x32xbf16>
    %c40 = arith.constant 40 : index
    %c0_39 = arith.constant 0 : index
    %188 = vector.load %arg13[%c40, %c0_39] : memref<64x32xbf16, #tpu.memory_space<vmem>>, vector<8x32xbf16>
    tpu.vector_store %arg13[%c40, %c0_39], %187 {strides = array<i32>} : memref<64x32xbf16, #tpu.memory_space<vmem>>, vector<8x32xbf16>,
    %189 = vector.extract_strided_slice %6 {offsets = [48, 0], sizes = [8, 128], strides = [1, 1]} : vector<64x128xf32> to vector<8x128xf32>
    %cst_40 = arith.constant dense<0.000000e+00> : vector<8x128xf32>
    %190 = tpu.matmul %187, %1, %cst_40 {dimension_numbers = #tpu.dot_dimension_numbers<[1], [0], [0], [1], [0, 0, 1, 1], [], []>} : vector<8x32xbf16>, vector<32x128xbf16>, vector<8x128xf32> -> vector<8x128xf32>
    %191 = arith.addf %189, %190 : vector<8x128xf32>
    %192 = vector.extract_strided_slice %191 {offsets = [0, 0], sizes = [8, 32], strides = [1, 1]} : vector<8x128xf32> to vector<8x32xf32>
    %193 = arith.negf %192 : vector<8x32xf32>
    %194 = math.exp %193 : vector<8x32xf32>
    %cst_41 = arith.constant 1.000000e+00 : f32
    %195 = vector.broadcast %cst_41 : f32 to vector<8x32xf32>
    %196 = arith.addf %195, %194 : vector<8x32xf32>
    %197 = arith.divf %195, %196 : vector<8x32xf32>
    %198 = vector.extract_strided_slice %191 {offsets = [0, 32], sizes = [8, 32], strides = [1, 1]} : vector<8x128xf32> to vector<8x32xf32>
    %199 = arith.negf %198 : vector<8x32xf32>
    %200 = math.exp %199 : vector<8x32xf32>
    %cst_42 = arith.constant 1.000000e+00 : f32
    %201 = vector.broadcast %cst_42 : f32 to vector<8x32xf32>
    %202 = arith.addf %201, %200 : vector<8x32xf32>
    %203 = arith.divf %201, %202 : vector<8x32xf32>
    %204 = vector.extract_strided_slice %191 {offsets = [0, 64], sizes = [8, 32], strides = [1, 1]} : vector<8x128xf32> to vector<8x32xf32>
    %205 = math.tanh %204 : vector<8x32xf32>
    %206 = vector.extract_strided_slice %191 {offsets = [0, 96], sizes = [8, 32], strides = [1, 1]} : vector<8x128xf32> to vector<8x32xf32>
    %207 = arith.negf %206 : vector<8x32xf32>
    %208 = math.exp %207 : vector<8x32xf32>
    %cst_43 = arith.constant 1.000000e+00 : f32
    %209 = vector.broadcast %cst_43 : f32 to vector<8x32xf32>
    %210 = arith.addf %209, %208 : vector<8x32xf32>
    %211 = arith.divf %209, %210 : vector<8x32xf32>
    %212 = arith.mulf %203, %184 : vector<8x32xf32>
    %213 = arith.mulf %197, %205 : vector<8x32xf32>
    %214 = arith.addf %212, %213 : vector<8x32xf32>
    %215 = math.tanh %214 : vector<8x32xf32>
    %216 = arith.mulf %211, %215 : vector<8x32xf32>
    %217 = arith.truncf %216 : vector<8x32xf32> to vector<8x32xbf16>
    %c48 = arith.constant 48 : index
    %c0_44 = arith.constant 0 : index
    %218 = vector.load %arg13[%c48, %c0_44] : memref<64x32xbf16, #tpu.memory_space<vmem>>, vector<8x32xbf16>
    tpu.vector_store %arg13[%c48, %c0_44], %217 {strides = array<i32>} : memref<64x32xbf16, #tpu.memory_space<vmem>>, vector<8x32xbf16>,
    %219 = vector.extract_strided_slice %6 {offsets = [56, 0], sizes = [8, 128], strides = [1, 1]} : vector<64x128xf32> to vector<8x128xf32>
    %cst_45 = arith.constant dense<0.000000e+00> : vector<8x128xf32>
    %220 = tpu.matmul %217, %1, %cst_45 {dimension_numbers = #tpu.dot_dimension_numbers<[1], [0], [0], [1], [0, 0, 1, 1], [], []>} : vector<8x32xbf16>, vector<32x128xbf16>, vector<8x128xf32> -> vector<8x128xf32>
    %221 = arith.addf %219, %220 : vector<8x128xf32>
    %222 = vector.extract_strided_slice %221 {offsets = [0, 0], sizes = [8, 32], strides = [1, 1]} : vector<8x128xf32> to vector<8x32xf32>
    %223 = arith.negf %222 : vector<8x32xf32>
    %224 = math.exp %223 : vector<8x32xf32>
    %cst_46 = arith.constant 1.000000e+00 : f32
    %225 = vector.broadcast %cst_46 : f32 to vector<8x32xf32>
    %226 = arith.addf %225, %224 : vector<8x32xf32>
    %227 = arith.divf %225, %226 : vector<8x32xf32>
    %228 = vector.extract_strided_slice %221 {offsets = [0, 32], sizes = [8, 32], strides = [1, 1]} : vector<8x128xf32> to vector<8x32xf32>
    %229 = arith.negf %228 : vector<8x32xf32>
    %230 = math.exp %229 : vector<8x32xf32>
    %cst_47 = arith.constant 1.000000e+00 : f32
    %231 = vector.broadcast %cst_47 : f32 to vector<8x32xf32>
    %232 = arith.addf %231, %230 : vector<8x32xf32>
    %233 = arith.divf %231, %232 : vector<8x32xf32>
    %234 = vector.extract_strided_slice %221 {offsets = [0, 64], sizes = [8, 32], strides = [1, 1]} : vector<8x128xf32> to vector<8x32xf32>
    %235 = math.tanh %234 : vector<8x32xf32>
    %236 = vector.extract_strided_slice %221 {offsets = [0, 96], sizes = [8, 32], strides = [1, 1]} : vector<8x128xf32> to vector<8x32xf32>
    %237 = arith.negf %236 : vector<8x32xf32>
    %238 = math.exp %237 : vector<8x32xf32>
    %cst_48 = arith.constant 1.000000e+00 : f32
    %239 = vector.broadcast %cst_48 : f32 to vector<8x32xf32>
    %240 = arith.addf %239, %238 : vector<8x32xf32>
    %241 = arith.divf %239, %240 : vector<8x32xf32>
    %242 = arith.mulf %233, %214 : vector<8x32xf32>
    %243 = arith.mulf %227, %235 : vector<8x32xf32>
    %244 = arith.addf %242, %243 : vector<8x32xf32>
    %245 = math.tanh %244 : vector<8x32xf32>
    %246 = arith.mulf %241, %245 : vector<8x32xf32>
    %247 = arith.truncf %246 : vector<8x32xf32> to vector<8x32xbf16>
    %c56 = arith.constant 56 : index
    %c0_49 = arith.constant 0 : index
    %248 = vector.load %arg13[%c56, %c0_49] : memref<64x32xbf16, #tpu.memory_space<vmem>>, vector<8x32xbf16>
    tpu.vector_store %arg13[%c56, %c0_49], %247 {strides = array<i32>} : memref<64x32xbf16, #tpu.memory_space<vmem>>, vector<8x32xbf16>,
    %c0_50 = arith.constant 0 : index
    %c0_51 = arith.constant 0 : index
    %249 = vector.load %arg4[%c0_50, %c0_51] : memref<32x128xbf16, #tpu.memory_space<vmem>>, vector<32x128xbf16>
    %c0_52 = arith.constant 0 : index
    %c0_53 = arith.constant 0 : index
    %250 = vector.load %arg5[%c0_52, %c0_53] : memref<32x128xbf16, #tpu.memory_space<vmem>>, vector<32x128xbf16>
    %c0_54 = arith.constant 0 : index
    %c0_55 = arith.constant 0 : index
    %251 = vector.load %arg6[%c0_54, %c0_55] : memref<1x128xf32, #tpu.memory_space<vmem>>, vector<1x128xf32>
    %c0_56 = arith.constant 0 : index
    %c0_57 = arith.constant 0 : index
    %252 = vector.load %arg13[%c0_56, %c0_57] : memref<64x32xbf16, #tpu.memory_space<vmem>>, vector<64x32xbf16>
    %cst_58 = arith.constant dense<0.000000e+00> : vector<64x128xf32>
    %253 = tpu.matmul %252, %249, %cst_58 {dimension_numbers = #tpu.dot_dimension_numbers<[1], [0], [0], [1], [0, 0, 1, 1], [], []>} : vector<64x32xbf16>, vector<32x128xbf16>, vector<64x128xf32> -> vector<64x128xf32>
    %254 = vector.broadcast %251 : vector<1x128xf32> to vector<64x128xf32>
    %255 = arith.addf %253, %254 : vector<64x128xf32>
    %cst_59 = arith.constant 0.000000e+00 : bf16
    %256 = vector.broadcast %cst_59 : bf16 to vector<8x32xbf16>
    %cst_60 = arith.constant 0.000000e+00 : f32
    %257 = vector.broadcast %cst_60 : f32 to vector<8x32xf32>
    %258 = vector.extract_strided_slice %255 {offsets = [0, 0], sizes = [8, 128], strides = [1, 1]} : vector<64x128xf32> to vector<8x128xf32>
    %cst_61 = arith.constant dense<0.000000e+00> : vector<8x128xf32>
    %259 = tpu.matmul %256, %250, %cst_61 {dimension_numbers = #tpu.dot_dimension_numbers<[1], [0], [0], [1], [0, 0, 1, 1], [], []>} : vector<8x32xbf16>, vector<32x128xbf16>, vector<8x128xf32> -> vector<8x128xf32>
    %260 = arith.addf %258, %259 : vector<8x128xf32>
    %261 = vector.extract_strided_slice %260 {offsets = [0, 0], sizes = [8, 32], strides = [1, 1]} : vector<8x128xf32> to vector<8x32xf32>
    %262 = arith.negf %261 : vector<8x32xf32>
    %263 = math.exp %262 : vector<8x32xf32>
    %cst_62 = arith.constant 1.000000e+00 : f32
    %264 = vector.broadcast %cst_62 : f32 to vector<8x32xf32>
    %265 = arith.addf %264, %263 : vector<8x32xf32>
    %266 = arith.divf %264, %265 : vector<8x32xf32>
    %267 = vector.extract_strided_slice %260 {offsets = [0, 32], sizes = [8, 32], strides = [1, 1]} : vector<8x128xf32> to vector<8x32xf32>
    %268 = arith.negf %267 : vector<8x32xf32>
    %269 = math.exp %268 : vector<8x32xf32>
    %cst_63 = arith.constant 1.000000e+00 : f32
    %270 = vector.broadcast %cst_63 : f32 to vector<8x32xf32>
    %271 = arith.addf %270, %269 : vector<8x32xf32>
    %272 = arith.divf %270, %271 : vector<8x32xf32>
    %273 = vector.extract_strided_slice %260 {offsets = [0, 64], sizes = [8, 32], strides = [1, 1]} : vector<8x128xf32> to vector<8x32xf32>
    %274 = math.tanh %273 : vector<8x32xf32>
    %275 = vector.extract_strided_slice %260 {offsets = [0, 96], sizes = [8, 32], strides = [1, 1]} : vector<8x128xf32> to vector<8x32xf32>
    %276 = arith.negf %275 : vector<8x32xf32>
    %277 = math.exp %276 : vector<8x32xf32>
    %cst_64 = arith.constant 1.000000e+00 : f32
    %278 = vector.broadcast %cst_64 : f32 to vector<8x32xf32>
    %279 = arith.addf %278, %277 : vector<8x32xf32>
    %280 = arith.divf %278, %279 : vector<8x32xf32>
    %281 = arith.mulf %272, %257 : vector<8x32xf32>
    %282 = arith.mulf %266, %274 : vector<8x32xf32>
    %283 = arith.addf %281, %282 : vector<8x32xf32>
    %284 = math.tanh %283 : vector<8x32xf32>
    %285 = arith.mulf %280, %284 : vector<8x32xf32>
    %286 = arith.truncf %285 : vector<8x32xf32> to vector<8x32xbf16>
    %c0_65 = arith.constant 0 : index
    %c0_66 = arith.constant 0 : index
    %287 = vector.load %arg13[%c0_65, %c0_66] : memref<64x32xbf16, #tpu.memory_space<vmem>>, vector<8x32xbf16>
    tpu.vector_store %arg13[%c0_65, %c0_66], %286 {strides = array<i32>} : memref<64x32xbf16, #tpu.memory_space<vmem>>, vector<8x32xbf16>,
    %288 = vector.extract_strided_slice %255 {offsets = [8, 0], sizes = [8, 128], strides = [1, 1]} : vector<64x128xf32> to vector<8x128xf32>
    %cst_67 = arith.constant dense<0.000000e+00> : vector<8x128xf32>
    %289 = tpu.matmul %286, %250, %cst_67 {dimension_numbers = #tpu.dot_dimension_numbers<[1], [0], [0], [1], [0, 0, 1, 1], [], []>} : vector<8x32xbf16>, vector<32x128xbf16>, vector<8x128xf32> -> vector<8x128xf32>
    %290 = arith.addf %288, %289 : vector<8x128xf32>
    %291 = vector.extract_strided_slice %290 {offsets = [0, 0], sizes = [8, 32], strides = [1, 1]} : vector<8x128xf32> to vector<8x32xf32>
    %292 = arith.negf %291 : vector<8x32xf32>
    %293 = math.exp %292 : vector<8x32xf32>
    %cst_68 = arith.constant 1.000000e+00 : f32
    %294 = vector.broadcast %cst_68 : f32 to vector<8x32xf32>
    %295 = arith.addf %294, %293 : vector<8x32xf32>
    %296 = arith.divf %294, %295 : vector<8x32xf32>
    %297 = vector.extract_strided_slice %290 {offsets = [0, 32], sizes = [8, 32], strides = [1, 1]} : vector<8x128xf32> to vector<8x32xf32>
    %298 = arith.negf %297 : vector<8x32xf32>
    %299 = math.exp %298 : vector<8x32xf32>
    %cst_69 = arith.constant 1.000000e+00 : f32
    %300 = vector.broadcast %cst_69 : f32 to vector<8x32xf32>
    %301 = arith.addf %300, %299 : vector<8x32xf32>
    %302 = arith.divf %300, %301 : vector<8x32xf32>
    %303 = vector.extract_strided_slice %290 {offsets = [0, 64], sizes = [8, 32], strides = [1, 1]} : vector<8x128xf32> to vector<8x32xf32>
    %304 = math.tanh %303 : vector<8x32xf32>
    %305 = vector.extract_strided_slice %290 {offsets = [0, 96], sizes = [8, 32], strides = [1, 1]} : vector<8x128xf32> to vector<8x32xf32>
    %306 = arith.negf %305 : vector<8x32xf32>
    %307 = math.exp %306 : vector<8x32xf32>
    %cst_70 = arith.constant 1.000000e+00 : f32
    %308 = vector.broadcast %cst_70 : f32 to vector<8x32xf32>
    %309 = arith.addf %308, %307 : vector<8x32xf32>
    %310 = arith.divf %308, %309 : vector<8x32xf32>
    %311 = arith.mulf %302, %283 : vector<8x32xf32>
    %312 = arith.mulf %296, %304 : vector<8x32xf32>
    %313 = arith.addf %311, %312 : vector<8x32xf32>
    %314 = math.tanh %313 : vector<8x32xf32>
    %315 = arith.mulf %310, %314 : vector<8x32xf32>
    %316 = arith.truncf %315 : vector<8x32xf32> to vector<8x32xbf16>
    %c8_71 = arith.constant 8 : index
    %c0_72 = arith.constant 0 : index
    %317 = vector.load %arg13[%c8_71, %c0_72] : memref<64x32xbf16, #tpu.memory_space<vmem>>, vector<8x32xbf16>
    tpu.vector_store %arg13[%c8_71, %c0_72], %316 {strides = array<i32>} : memref<64x32xbf16, #tpu.memory_space<vmem>>, vector<8x32xbf16>,
    %318 = vector.extract_strided_slice %255 {offsets = [16, 0], sizes = [8, 128], strides = [1, 1]} : vector<64x128xf32> to vector<8x128xf32>
    %cst_73 = arith.constant dense<0.000000e+00> : vector<8x128xf32>
    %319 = tpu.matmul %316, %250, %cst_73 {dimension_numbers = #tpu.dot_dimension_numbers<[1], [0], [0], [1], [0, 0, 1, 1], [], []>} : vector<8x32xbf16>, vector<32x128xbf16>, vector<8x128xf32> -> vector<8x128xf32>
    %320 = arith.addf %318, %319 : vector<8x128xf32>
    %321 = vector.extract_strided_slice %320 {offsets = [0, 0], sizes = [8, 32], strides = [1, 1]} : vector<8x128xf32> to vector<8x32xf32>
    %322 = arith.negf %321 : vector<8x32xf32>
    %323 = math.exp %322 : vector<8x32xf32>
    %cst_74 = arith.constant 1.000000e+00 : f32
    %324 = vector.broadcast %cst_74 : f32 to vector<8x32xf32>
    %325 = arith.addf %324, %323 : vector<8x32xf32>
    %326 = arith.divf %324, %325 : vector<8x32xf32>
    %327 = vector.extract_strided_slice %320 {offsets = [0, 32], sizes = [8, 32], strides = [1, 1]} : vector<8x128xf32> to vector<8x32xf32>
    %328 = arith.negf %327 : vector<8x32xf32>
    %329 = math.exp %328 : vector<8x32xf32>
    %cst_75 = arith.constant 1.000000e+00 : f32
    %330 = vector.broadcast %cst_75 : f32 to vector<8x32xf32>
    %331 = arith.addf %330, %329 : vector<8x32xf32>
    %332 = arith.divf %330, %331 : vector<8x32xf32>
    %333 = vector.extract_strided_slice %320 {offsets = [0, 64], sizes = [8, 32], strides = [1, 1]} : vector<8x128xf32> to vector<8x32xf32>
    %334 = math.tanh %333 : vector<8x32xf32>
    %335 = vector.extract_strided_slice %320 {offsets = [0, 96], sizes = [8, 32], strides = [1, 1]} : vector<8x128xf32> to vector<8x32xf32>
    %336 = arith.negf %335 : vector<8x32xf32>
    %337 = math.exp %336 : vector<8x32xf32>
    %cst_76 = arith.constant 1.000000e+00 : f32
    %338 = vector.broadcast %cst_76 : f32 to vector<8x32xf32>
    %339 = arith.addf %338, %337 : vector<8x32xf32>
    %340 = arith.divf %338, %339 : vector<8x32xf32>
    %341 = arith.mulf %332, %313 : vector<8x32xf32>
    %342 = arith.mulf %326, %334 : vector<8x32xf32>
    %343 = arith.addf %341, %342 : vector<8x32xf32>
    %344 = math.tanh %343 : vector<8x32xf32>
    %345 = arith.mulf %340, %344 : vector<8x32xf32>
    %346 = arith.truncf %345 : vector<8x32xf32> to vector<8x32xbf16>
    %c16_77 = arith.constant 16 : index
    %c0_78 = arith.constant 0 : index
    %347 = vector.load %arg13[%c16_77, %c0_78] : memref<64x32xbf16, #tpu.memory_space<vmem>>, vector<8x32xbf16>
    tpu.vector_store %arg13[%c16_77, %c0_78], %346 {strides = array<i32>} : memref<64x32xbf16, #tpu.memory_space<vmem>>, vector<8x32xbf16>,
    %348 = vector.extract_strided_slice %255 {offsets = [24, 0], sizes = [8, 128], strides = [1, 1]} : vector<64x128xf32> to vector<8x128xf32>
    %cst_79 = arith.constant dense<0.000000e+00> : vector<8x128xf32>
    %349 = tpu.matmul %346, %250, %cst_79 {dimension_numbers = #tpu.dot_dimension_numbers<[1], [0], [0], [1], [0, 0, 1, 1], [], []>} : vector<8x32xbf16>, vector<32x128xbf16>, vector<8x128xf32> -> vector<8x128xf32>
    %350 = arith.addf %348, %349 : vector<8x128xf32>
    %351 = vector.extract_strided_slice %350 {offsets = [0, 0], sizes = [8, 32], strides = [1, 1]} : vector<8x128xf32> to vector<8x32xf32>
    %352 = arith.negf %351 : vector<8x32xf32>
    %353 = math.exp %352 : vector<8x32xf32>
    %cst_80 = arith.constant 1.000000e+00 : f32
    %354 = vector.broadcast %cst_80 : f32 to vector<8x32xf32>
    %355 = arith.addf %354, %353 : vector<8x32xf32>
    %356 = arith.divf %354, %355 : vector<8x32xf32>
    %357 = vector.extract_strided_slice %350 {offsets = [0, 32], sizes = [8, 32], strides = [1, 1]} : vector<8x128xf32> to vector<8x32xf32>
    %358 = arith.negf %357 : vector<8x32xf32>
    %359 = math.exp %358 : vector<8x32xf32>
    %cst_81 = arith.constant 1.000000e+00 : f32
    %360 = vector.broadcast %cst_81 : f32 to vector<8x32xf32>
    %361 = arith.addf %360, %359 : vector<8x32xf32>
    %362 = arith.divf %360, %361 : vector<8x32xf32>
    %363 = vector.extract_strided_slice %350 {offsets = [0, 64], sizes = [8, 32], strides = [1, 1]} : vector<8x128xf32> to vector<8x32xf32>
    %364 = math.tanh %363 : vector<8x32xf32>
    %365 = vector.extract_strided_slice %350 {offsets = [0, 96], sizes = [8, 32], strides = [1, 1]} : vector<8x128xf32> to vector<8x32xf32>
    %366 = arith.negf %365 : vector<8x32xf32>
    %367 = math.exp %366 : vector<8x32xf32>
    %cst_82 = arith.constant 1.000000e+00 : f32
    %368 = vector.broadcast %cst_82 : f32 to vector<8x32xf32>
    %369 = arith.addf %368, %367 : vector<8x32xf32>
    %370 = arith.divf %368, %369 : vector<8x32xf32>
    %371 = arith.mulf %362, %343 : vector<8x32xf32>
    %372 = arith.mulf %356, %364 : vector<8x32xf32>
    %373 = arith.addf %371, %372 : vector<8x32xf32>
    %374 = math.tanh %373 : vector<8x32xf32>
    %375 = arith.mulf %370, %374 : vector<8x32xf32>
    %376 = arith.truncf %375 : vector<8x32xf32> to vector<8x32xbf16>
    %c24_83 = arith.constant 24 : index
    %c0_84 = arith.constant 0 : index
    %377 = vector.load %arg13[%c24_83, %c0_84] : memref<64x32xbf16, #tpu.memory_space<vmem>>, vector<8x32xbf16>
    tpu.vector_store %arg13[%c24_83, %c0_84], %376 {strides = array<i32>} : memref<64x32xbf16, #tpu.memory_space<vmem>>, vector<8x32xbf16>,
    %378 = vector.extract_strided_slice %255 {offsets = [32, 0], sizes = [8, 128], strides = [1, 1]} : vector<64x128xf32> to vector<8x128xf32>
    %cst_85 = arith.constant dense<0.000000e+00> : vector<8x128xf32>
    %379 = tpu.matmul %376, %250, %cst_85 {dimension_numbers = #tpu.dot_dimension_numbers<[1], [0], [0], [1], [0, 0, 1, 1], [], []>} : vector<8x32xbf16>, vector<32x128xbf16>, vector<8x128xf32> -> vector<8x128xf32>
    %380 = arith.addf %378, %379 : vector<8x128xf32>
    %381 = vector.extract_strided_slice %380 {offsets = [0, 0], sizes = [8, 32], strides = [1, 1]} : vector<8x128xf32> to vector<8x32xf32>
    %382 = arith.negf %381 : vector<8x32xf32>
    %383 = math.exp %382 : vector<8x32xf32>
    %cst_86 = arith.constant 1.000000e+00 : f32
    %384 = vector.broadcast %cst_86 : f32 to vector<8x32xf32>
    %385 = arith.addf %384, %383 : vector<8x32xf32>
    %386 = arith.divf %384, %385 : vector<8x32xf32>
    %387 = vector.extract_strided_slice %380 {offsets = [0, 32], sizes = [8, 32], strides = [1, 1]} : vector<8x128xf32> to vector<8x32xf32>
    %388 = arith.negf %387 : vector<8x32xf32>
    %389 = math.exp %388 : vector<8x32xf32>
    %cst_87 = arith.constant 1.000000e+00 : f32
    %390 = vector.broadcast %cst_87 : f32 to vector<8x32xf32>
    %391 = arith.addf %390, %389 : vector<8x32xf32>
    %392 = arith.divf %390, %391 : vector<8x32xf32>
    %393 = vector.extract_strided_slice %380 {offsets = [0, 64], sizes = [8, 32], strides = [1, 1]} : vector<8x128xf32> to vector<8x32xf32>
    %394 = math.tanh %393 : vector<8x32xf32>
    %395 = vector.extract_strided_slice %380 {offsets = [0, 96], sizes = [8, 32], strides = [1, 1]} : vector<8x128xf32> to vector<8x32xf32>
    %396 = arith.negf %395 : vector<8x32xf32>
    %397 = math.exp %396 : vector<8x32xf32>
    %cst_88 = arith.constant 1.000000e+00 : f32
    %398 = vector.broadcast %cst_88 : f32 to vector<8x32xf32>
    %399 = arith.addf %398, %397 : vector<8x32xf32>
    %400 = arith.divf %398, %399 : vector<8x32xf32>
    %401 = arith.mulf %392, %373 : vector<8x32xf32>
    %402 = arith.mulf %386, %394 : vector<8x32xf32>
    %403 = arith.addf %401, %402 : vector<8x32xf32>
    %404 = math.tanh %403 : vector<8x32xf32>
    %405 = arith.mulf %400, %404 : vector<8x32xf32>
    %406 = arith.truncf %405 : vector<8x32xf32> to vector<8x32xbf16>
    %c32_89 = arith.constant 32 : index
    %c0_90 = arith.constant 0 : index
    %407 = vector.load %arg13[%c32_89, %c0_90] : memref<64x32xbf16, #tpu.memory_space<vmem>>, vector<8x32xbf16>
    tpu.vector_store %arg13[%c32_89, %c0_90], %406 {strides = array<i32>} : memref<64x32xbf16, #tpu.memory_space<vmem>>, vector<8x32xbf16>,
    %408 = vector.extract_strided_slice %255 {offsets = [40, 0], sizes = [8, 128], strides = [1, 1]} : vector<64x128xf32> to vector<8x128xf32>
    %cst_91 = arith.constant dense<0.000000e+00> : vector<8x128xf32>
    %409 = tpu.matmul %406, %250, %cst_91 {dimension_numbers = #tpu.dot_dimension_numbers<[1], [0], [0], [1], [0, 0, 1, 1], [], []>} : vector<8x32xbf16>, vector<32x128xbf16>, vector<8x128xf32> -> vector<8x128xf32>
    %410 = arith.addf %408, %409 : vector<8x128xf32>
    %411 = vector.extract_strided_slice %410 {offsets = [0, 0], sizes = [8, 32], strides = [1, 1]} : vector<8x128xf32> to vector<8x32xf32>
    %412 = arith.negf %411 : vector<8x32xf32>
    %413 = math.exp %412 : vector<8x32xf32>
    %cst_92 = arith.constant 1.000000e+00 : f32
    %414 = vector.broadcast %cst_92 : f32 to vector<8x32xf32>
    %415 = arith.addf %414, %413 : vector<8x32xf32>
    %416 = arith.divf %414, %415 : vector<8x32xf32>
    %417 = vector.extract_strided_slice %410 {offsets = [0, 32], sizes = [8, 32], strides = [1, 1]} : vector<8x128xf32> to vector<8x32xf32>
    %418 = arith.negf %417 : vector<8x32xf32>
    %419 = math.exp %418 : vector<8x32xf32>
    %cst_93 = arith.constant 1.000000e+00 : f32
    %420 = vector.broadcast %cst_93 : f32 to vector<8x32xf32>
    %421 = arith.addf %420, %419 : vector<8x32xf32>
    %422 = arith.divf %420, %421 : vector<8x32xf32>
    %423 = vector.extract_strided_slice %410 {offsets = [0, 64], sizes = [8, 32], strides = [1, 1]} : vector<8x128xf32> to vector<8x32xf32>
    %424 = math.tanh %423 : vector<8x32xf32>
    %425 = vector.extract_strided_slice %410 {offsets = [0, 96], sizes = [8, 32], strides = [1, 1]} : vector<8x128xf32> to vector<8x32xf32>
    %426 = arith.negf %425 : vector<8x32xf32>
    %427 = math.exp %426 : vector<8x32xf32>
    %cst_94 = arith.constant 1.000000e+00 : f32
    %428 = vector.broadcast %cst_94 : f32 to vector<8x32xf32>
    %429 = arith.addf %428, %427 : vector<8x32xf32>
    %430 = arith.divf %428, %429 : vector<8x32xf32>
    %431 = arith.mulf %422, %403 : vector<8x32xf32>
    %432 = arith.mulf %416, %424 : vector<8x32xf32>
    %433 = arith.addf %431, %432 : vector<8x32xf32>
    %434 = math.tanh %433 : vector<8x32xf32>
    %435 = arith.mulf %430, %434 : vector<8x32xf32>
    %436 = arith.truncf %435 : vector<8x32xf32> to vector<8x32xbf16>
    %c40_95 = arith.constant 40 : index
    %c0_96 = arith.constant 0 : index
    %437 = vector.load %arg13[%c40_95, %c0_96] : memref<64x32xbf16, #tpu.memory_space<vmem>>, vector<8x32xbf16>
    tpu.vector_store %arg13[%c40_95, %c0_96], %436 {strides = array<i32>} : memref<64x32xbf16, #tpu.memory_space<vmem>>, vector<8x32xbf16>,
    %438 = vector.extract_strided_slice %255 {offsets = [48, 0], sizes = [8, 128], strides = [1, 1]} : vector<64x128xf32> to vector<8x128xf32>
    %cst_97 = arith.constant dense<0.000000e+00> : vector<8x128xf32>
    %439 = tpu.matmul %436, %250, %cst_97 {dimension_numbers = #tpu.dot_dimension_numbers<[1], [0], [0], [1], [0, 0, 1, 1], [], []>} : vector<8x32xbf16>, vector<32x128xbf16>, vector<8x128xf32> -> vector<8x128xf32>
    %440 = arith.addf %438, %439 : vector<8x128xf32>
    %441 = vector.extract_strided_slice %440 {offsets = [0, 0], sizes = [8, 32], strides = [1, 1]} : vector<8x128xf32> to vector<8x32xf32>
    %442 = arith.negf %441 : vector<8x32xf32>
    %443 = math.exp %442 : vector<8x32xf32>
    %cst_98 = arith.constant 1.000000e+00 : f32
    %444 = vector.broadcast %cst_98 : f32 to vector<8x32xf32>
    %445 = arith.addf %444, %443 : vector<8x32xf32>
    %446 = arith.divf %444, %445 : vector<8x32xf32>
    %447 = vector.extract_strided_slice %440 {offsets = [0, 32], sizes = [8, 32], strides = [1, 1]} : vector<8x128xf32> to vector<8x32xf32>
    %448 = arith.negf %447 : vector<8x32xf32>
    %449 = math.exp %448 : vector<8x32xf32>
    %cst_99 = arith.constant 1.000000e+00 : f32
    %450 = vector.broadcast %cst_99 : f32 to vector<8x32xf32>
    %451 = arith.addf %450, %449 : vector<8x32xf32>
    %452 = arith.divf %450, %451 : vector<8x32xf32>
    %453 = vector.extract_strided_slice %440 {offsets = [0, 64], sizes = [8, 32], strides = [1, 1]} : vector<8x128xf32> to vector<8x32xf32>
    %454 = math.tanh %453 : vector<8x32xf32>
    %455 = vector.extract_strided_slice %440 {offsets = [0, 96], sizes = [8, 32], strides = [1, 1]} : vector<8x128xf32> to vector<8x32xf32>
    %456 = arith.negf %455 : vector<8x32xf32>
    %457 = math.exp %456 : vector<8x32xf32>
    %cst_100 = arith.constant 1.000000e+00 : f32
    %458 = vector.broadcast %cst_100 : f32 to vector<8x32xf32>
    %459 = arith.addf %458, %457 : vector<8x32xf32>
    %460 = arith.divf %458, %459 : vector<8x32xf32>
    %461 = arith.mulf %452, %433 : vector<8x32xf32>
    %462 = arith.mulf %446, %454 : vector<8x32xf32>
    %463 = arith.addf %461, %462 : vector<8x32xf32>
    %464 = math.tanh %463 : vector<8x32xf32>
    %465 = arith.mulf %460, %464 : vector<8x32xf32>
    %466 = arith.truncf %465 : vector<8x32xf32> to vector<8x32xbf16>
    %c48_101 = arith.constant 48 : index
    %c0_102 = arith.constant 0 : index
    %467 = vector.load %arg13[%c48_101, %c0_102] : memref<64x32xbf16, #tpu.memory_space<vmem>>, vector<8x32xbf16>
    tpu.vector_store %arg13[%c48_101, %c0_102], %466 {strides = array<i32>} : memref<64x32xbf16, #tpu.memory_space<vmem>>, vector<8x32xbf16>,
    %468 = vector.extract_strided_slice %255 {offsets = [56, 0], sizes = [8, 128], strides = [1, 1]} : vector<64x128xf32> to vector<8x128xf32>
    %cst_103 = arith.constant dense<0.000000e+00> : vector<8x128xf32>
    %469 = tpu.matmul %466, %250, %cst_103 {dimension_numbers = #tpu.dot_dimension_numbers<[1], [0], [0], [1], [0, 0, 1, 1], [], []>} : vector<8x32xbf16>, vector<32x128xbf16>, vector<8x128xf32> -> vector<8x128xf32>
    %470 = arith.addf %468, %469 : vector<8x128xf32>
    %471 = vector.extract_strided_slice %470 {offsets = [0, 0], sizes = [8, 32], strides = [1, 1]} : vector<8x128xf32> to vector<8x32xf32>
    %472 = arith.negf %471 : vector<8x32xf32>
    %473 = math.exp %472 : vector<8x32xf32>
    %cst_104 = arith.constant 1.000000e+00 : f32
    %474 = vector.broadcast %cst_104 : f32 to vector<8x32xf32>
    %475 = arith.addf %474, %473 : vector<8x32xf32>
    %476 = arith.divf %474, %475 : vector<8x32xf32>
    %477 = vector.extract_strided_slice %470 {offsets = [0, 32], sizes = [8, 32], strides = [1, 1]} : vector<8x128xf32> to vector<8x32xf32>
    %478 = arith.negf %477 : vector<8x32xf32>
    %479 = math.exp %478 : vector<8x32xf32>
    %cst_105 = arith.constant 1.000000e+00 : f32
    %480 = vector.broadcast %cst_105 : f32 to vector<8x32xf32>
    %481 = arith.addf %480, %479 : vector<8x32xf32>
    %482 = arith.divf %480, %481 : vector<8x32xf32>
    %483 = vector.extract_strided_slice %470 {offsets = [0, 64], sizes = [8, 32], strides = [1, 1]} : vector<8x128xf32> to vector<8x32xf32>
    %484 = math.tanh %483 : vector<8x32xf32>
    %485 = vector.extract_strided_slice %470 {offsets = [0, 96], sizes = [8, 32], strides = [1, 1]} : vector<8x128xf32> to vector<8x32xf32>
    %486 = arith.negf %485 : vector<8x32xf32>
    %487 = math.exp %486 : vector<8x32xf32>
    %cst_106 = arith.constant 1.000000e+00 : f32
    %488 = vector.broadcast %cst_106 : f32 to vector<8x32xf32>
    %489 = arith.addf %488, %487 : vector<8x32xf32>
    %490 = arith.divf %488, %489 : vector<8x32xf32>
    %491 = arith.mulf %482, %463 : vector<8x32xf32>
    %492 = arith.mulf %476, %484 : vector<8x32xf32>
    %493 = arith.addf %491, %492 : vector<8x32xf32>
    %494 = math.tanh %493 : vector<8x32xf32>
    %495 = arith.mulf %490, %494 : vector<8x32xf32>
    %496 = arith.truncf %495 : vector<8x32xf32> to vector<8x32xbf16>
    %c56_107 = arith.constant 56 : index
    %c0_108 = arith.constant 0 : index
    %497 = vector.load %arg13[%c56_107, %c0_108] : memref<64x32xbf16, #tpu.memory_space<vmem>>, vector<8x32xbf16>
    tpu.vector_store %arg13[%c56_107, %c0_108], %496 {strides = array<i32>} : memref<64x32xbf16, #tpu.memory_space<vmem>>, vector<8x32xbf16>,
    %c0_109 = arith.constant 0 : index
    %c0_110 = arith.constant 0 : index
    %498 = vector.load %arg7[%c0_109, %c0_110] : memref<32x128xbf16, #tpu.memory_space<vmem>>, vector<32x128xbf16>
    %c0_111 = arith.constant 0 : index
    %c0_112 = arith.constant 0 : index
    %499 = vector.load %arg8[%c0_111, %c0_112] : memref<32x128xbf16, #tpu.memory_space<vmem>>, vector<32x128xbf16>
    %c0_113 = arith.constant 0 : index
    %c0_114 = arith.constant 0 : index
    %500 = vector.load %arg9[%c0_113, %c0_114] : memref<1x128xf32, #tpu.memory_space<vmem>>, vector<1x128xf32>
    %c0_115 = arith.constant 0 : index
    %c0_116 = arith.constant 0 : index
    %501 = vector.load %arg13[%c0_115, %c0_116] : memref<64x32xbf16, #tpu.memory_space<vmem>>, vector<64x32xbf16>
    %cst_117 = arith.constant dense<0.000000e+00> : vector<64x128xf32>
    %502 = tpu.matmul %501, %498, %cst_117 {dimension_numbers = #tpu.dot_dimension_numbers<[1], [0], [0], [1], [0, 0, 1, 1], [], []>} : vector<64x32xbf16>, vector<32x128xbf16>, vector<64x128xf32> -> vector<64x128xf32>
    %503 = vector.broadcast %500 : vector<1x128xf32> to vector<64x128xf32>
    %504 = arith.addf %502, %503 : vector<64x128xf32>
    %cst_118 = arith.constant 0.000000e+00 : bf16
    %505 = vector.broadcast %cst_118 : bf16 to vector<8x32xbf16>
    %cst_119 = arith.constant 0.000000e+00 : f32
    %506 = vector.broadcast %cst_119 : f32 to vector<8x32xf32>
    %507 = vector.extract_strided_slice %504 {offsets = [0, 0], sizes = [8, 128], strides = [1, 1]} : vector<64x128xf32> to vector<8x128xf32>
    %cst_120 = arith.constant dense<0.000000e+00> : vector<8x128xf32>
    %508 = tpu.matmul %505, %499, %cst_120 {dimension_numbers = #tpu.dot_dimension_numbers<[1], [0], [0], [1], [0, 0, 1, 1], [], []>} : vector<8x32xbf16>, vector<32x128xbf16>, vector<8x128xf32> -> vector<8x128xf32>
    %509 = arith.addf %507, %508 : vector<8x128xf32>
    %510 = vector.extract_strided_slice %509 {offsets = [0, 0], sizes = [8, 32], strides = [1, 1]} : vector<8x128xf32> to vector<8x32xf32>
    %511 = arith.negf %510 : vector<8x32xf32>
    %512 = math.exp %511 : vector<8x32xf32>
    %cst_121 = arith.constant 1.000000e+00 : f32
    %513 = vector.broadcast %cst_121 : f32 to vector<8x32xf32>
    %514 = arith.addf %513, %512 : vector<8x32xf32>
    %515 = arith.divf %513, %514 : vector<8x32xf32>
    %516 = vector.extract_strided_slice %509 {offsets = [0, 32], sizes = [8, 32], strides = [1, 1]} : vector<8x128xf32> to vector<8x32xf32>
    %517 = arith.negf %516 : vector<8x32xf32>
    %518 = math.exp %517 : vector<8x32xf32>
    %cst_122 = arith.constant 1.000000e+00 : f32
    %519 = vector.broadcast %cst_122 : f32 to vector<8x32xf32>
    %520 = arith.addf %519, %518 : vector<8x32xf32>
    %521 = arith.divf %519, %520 : vector<8x32xf32>
    %522 = vector.extract_strided_slice %509 {offsets = [0, 64], sizes = [8, 32], strides = [1, 1]} : vector<8x128xf32> to vector<8x32xf32>
    %523 = math.tanh %522 : vector<8x32xf32>
    %524 = vector.extract_strided_slice %509 {offsets = [0, 96], sizes = [8, 32], strides = [1, 1]} : vector<8x128xf32> to vector<8x32xf32>
    %525 = arith.negf %524 : vector<8x32xf32>
    %526 = math.exp %525 : vector<8x32xf32>
    %cst_123 = arith.constant 1.000000e+00 : f32
    %527 = vector.broadcast %cst_123 : f32 to vector<8x32xf32>
    %528 = arith.addf %527, %526 : vector<8x32xf32>
    %529 = arith.divf %527, %528 : vector<8x32xf32>
    %530 = arith.mulf %521, %506 : vector<8x32xf32>
    %531 = arith.mulf %515, %523 : vector<8x32xf32>
    %532 = arith.addf %530, %531 : vector<8x32xf32>
    %533 = math.tanh %532 : vector<8x32xf32>
    %534 = arith.mulf %529, %533 : vector<8x32xf32>
    %535 = arith.truncf %534 : vector<8x32xf32> to vector<8x32xbf16>
    %536 = vector.extract_strided_slice %504 {offsets = [8, 0], sizes = [8, 128], strides = [1, 1]} : vector<64x128xf32> to vector<8x128xf32>
    %cst_124 = arith.constant dense<0.000000e+00> : vector<8x128xf32>
    %537 = tpu.matmul %535, %499, %cst_124 {dimension_numbers = #tpu.dot_dimension_numbers<[1], [0], [0], [1], [0, 0, 1, 1], [], []>} : vector<8x32xbf16>, vector<32x128xbf16>, vector<8x128xf32> -> vector<8x128xf32>
    %538 = arith.addf %536, %537 : vector<8x128xf32>
    %539 = vector.extract_strided_slice %538 {offsets = [0, 0], sizes = [8, 32], strides = [1, 1]} : vector<8x128xf32> to vector<8x32xf32>
    %540 = arith.negf %539 : vector<8x32xf32>
    %541 = math.exp %540 : vector<8x32xf32>
    %cst_125 = arith.constant 1.000000e+00 : f32
    %542 = vector.broadcast %cst_125 : f32 to vector<8x32xf32>
    %543 = arith.addf %542, %541 : vector<8x32xf32>
    %544 = arith.divf %542, %543 : vector<8x32xf32>
    %545 = vector.extract_strided_slice %538 {offsets = [0, 32], sizes = [8, 32], strides = [1, 1]} : vector<8x128xf32> to vector<8x32xf32>
    %546 = arith.negf %545 : vector<8x32xf32>
    %547 = math.exp %546 : vector<8x32xf32>
    %cst_126 = arith.constant 1.000000e+00 : f32
    %548 = vector.broadcast %cst_126 : f32 to vector<8x32xf32>
    %549 = arith.addf %548, %547 : vector<8x32xf32>
    %550 = arith.divf %548, %549 : vector<8x32xf32>
    %551 = vector.extract_strided_slice %538 {offsets = [0, 64], sizes = [8, 32], strides = [1, 1]} : vector<8x128xf32> to vector<8x32xf32>
    %552 = math.tanh %551 : vector<8x32xf32>
    %553 = vector.extract_strided_slice %538 {offsets = [0, 96], sizes = [8, 32], strides = [1, 1]} : vector<8x128xf32> to vector<8x32xf32>
    %554 = arith.negf %553 : vector<8x32xf32>
    %555 = math.exp %554 : vector<8x32xf32>
    %cst_127 = arith.constant 1.000000e+00 : f32
    %556 = vector.broadcast %cst_127 : f32 to vector<8x32xf32>
    %557 = arith.addf %556, %555 : vector<8x32xf32>
    %558 = arith.divf %556, %557 : vector<8x32xf32>
    %559 = arith.mulf %550, %532 : vector<8x32xf32>
    %560 = arith.mulf %544, %552 : vector<8x32xf32>
    %561 = arith.addf %559, %560 : vector<8x32xf32>
    %562 = math.tanh %561 : vector<8x32xf32>
    %563 = arith.mulf %558, %562 : vector<8x32xf32>
    %564 = arith.truncf %563 : vector<8x32xf32> to vector<8x32xbf16>
    %565 = vector.extract_strided_slice %504 {offsets = [16, 0], sizes = [8, 128], strides = [1, 1]} : vector<64x128xf32> to vector<8x128xf32>
    %cst_128 = arith.constant dense<0.000000e+00> : vector<8x128xf32>
    %566 = tpu.matmul %564, %499, %cst_128 {dimension_numbers = #tpu.dot_dimension_numbers<[1], [0], [0], [1], [0, 0, 1, 1], [], []>} : vector<8x32xbf16>, vector<32x128xbf16>, vector<8x128xf32> -> vector<8x128xf32>
    %567 = arith.addf %565, %566 : vector<8x128xf32>
    %568 = vector.extract_strided_slice %567 {offsets = [0, 0], sizes = [8, 32], strides = [1, 1]} : vector<8x128xf32> to vector<8x32xf32>
    %569 = arith.negf %568 : vector<8x32xf32>
    %570 = math.exp %569 : vector<8x32xf32>
    %cst_129 = arith.constant 1.000000e+00 : f32
    %571 = vector.broadcast %cst_129 : f32 to vector<8x32xf32>
    %572 = arith.addf %571, %570 : vector<8x32xf32>
    %573 = arith.divf %571, %572 : vector<8x32xf32>
    %574 = vector.extract_strided_slice %567 {offsets = [0, 32], sizes = [8, 32], strides = [1, 1]} : vector<8x128xf32> to vector<8x32xf32>
    %575 = arith.negf %574 : vector<8x32xf32>
    %576 = math.exp %575 : vector<8x32xf32>
    %cst_130 = arith.constant 1.000000e+00 : f32
    %577 = vector.broadcast %cst_130 : f32 to vector<8x32xf32>
    %578 = arith.addf %577, %576 : vector<8x32xf32>
    %579 = arith.divf %577, %578 : vector<8x32xf32>
    %580 = vector.extract_strided_slice %567 {offsets = [0, 64], sizes = [8, 32], strides = [1, 1]} : vector<8x128xf32> to vector<8x32xf32>
    %581 = math.tanh %580 : vector<8x32xf32>
    %582 = vector.extract_strided_slice %567 {offsets = [0, 96], sizes = [8, 32], strides = [1, 1]} : vector<8x128xf32> to vector<8x32xf32>
    %583 = arith.negf %582 : vector<8x32xf32>
    %584 = math.exp %583 : vector<8x32xf32>
    %cst_131 = arith.constant 1.000000e+00 : f32
    %585 = vector.broadcast %cst_131 : f32 to vector<8x32xf32>
    %586 = arith.addf %585, %584 : vector<8x32xf32>
    %587 = arith.divf %585, %586 : vector<8x32xf32>
    %588 = arith.mulf %579, %561 : vector<8x32xf32>
    %589 = arith.mulf %573, %581 : vector<8x32xf32>
    %590 = arith.addf %588, %589 : vector<8x32xf32>
    %591 = math.tanh %590 : vector<8x32xf32>
    %592 = arith.mulf %587, %591 : vector<8x32xf32>
    %593 = arith.truncf %592 : vector<8x32xf32> to vector<8x32xbf16>
    %594 = vector.extract_strided_slice %504 {offsets = [24, 0], sizes = [8, 128], strides = [1, 1]} : vector<64x128xf32> to vector<8x128xf32>
    %cst_132 = arith.constant dense<0.000000e+00> : vector<8x128xf32>
    %595 = tpu.matmul %593, %499, %cst_132 {dimension_numbers = #tpu.dot_dimension_numbers<[1], [0], [0], [1], [0, 0, 1, 1], [], []>} : vector<8x32xbf16>, vector<32x128xbf16>, vector<8x128xf32> -> vector<8x128xf32>
    %596 = arith.addf %594, %595 : vector<8x128xf32>
    %597 = vector.extract_strided_slice %596 {offsets = [0, 0], sizes = [8, 32], strides = [1, 1]} : vector<8x128xf32> to vector<8x32xf32>
    %598 = arith.negf %597 : vector<8x32xf32>
    %599 = math.exp %598 : vector<8x32xf32>
    %cst_133 = arith.constant 1.000000e+00 : f32
    %600 = vector.broadcast %cst_133 : f32 to vector<8x32xf32>
    %601 = arith.addf %600, %599 : vector<8x32xf32>
    %602 = arith.divf %600, %601 : vector<8x32xf32>
    %603 = vector.extract_strided_slice %596 {offsets = [0, 32], sizes = [8, 32], strides = [1, 1]} : vector<8x128xf32> to vector<8x32xf32>
    %604 = arith.negf %603 : vector<8x32xf32>
    %605 = math.exp %604 : vector<8x32xf32>
    %cst_134 = arith.constant 1.000000e+00 : f32
    %606 = vector.broadcast %cst_134 : f32 to vector<8x32xf32>
    %607 = arith.addf %606, %605 : vector<8x32xf32>
    %608 = arith.divf %606, %607 : vector<8x32xf32>
    %609 = vector.extract_strided_slice %596 {offsets = [0, 64], sizes = [8, 32], strides = [1, 1]} : vector<8x128xf32> to vector<8x32xf32>
    %610 = math.tanh %609 : vector<8x32xf32>
    %611 = vector.extract_strided_slice %596 {offsets = [0, 96], sizes = [8, 32], strides = [1, 1]} : vector<8x128xf32> to vector<8x32xf32>
    %612 = arith.negf %611 : vector<8x32xf32>
    %613 = math.exp %612 : vector<8x32xf32>
    %cst_135 = arith.constant 1.000000e+00 : f32
    %614 = vector.broadcast %cst_135 : f32 to vector<8x32xf32>
    %615 = arith.addf %614, %613 : vector<8x32xf32>
    %616 = arith.divf %614, %615 : vector<8x32xf32>
    %617 = arith.mulf %608, %590 : vector<8x32xf32>
    %618 = arith.mulf %602, %610 : vector<8x32xf32>
    %619 = arith.addf %617, %618 : vector<8x32xf32>
    %620 = math.tanh %619 : vector<8x32xf32>
    %621 = arith.mulf %616, %620 : vector<8x32xf32>
    %622 = arith.truncf %621 : vector<8x32xf32> to vector<8x32xbf16>
    %623 = vector.extract_strided_slice %504 {offsets = [32, 0], sizes = [8, 128], strides = [1, 1]} : vector<64x128xf32> to vector<8x128xf32>
    %cst_136 = arith.constant dense<0.000000e+00> : vector<8x128xf32>
    %624 = tpu.matmul %622, %499, %cst_136 {dimension_numbers = #tpu.dot_dimension_numbers<[1], [0], [0], [1], [0, 0, 1, 1], [], []>} : vector<8x32xbf16>, vector<32x128xbf16>, vector<8x128xf32> -> vector<8x128xf32>
    %625 = arith.addf %623, %624 : vector<8x128xf32>
    %626 = vector.extract_strided_slice %625 {offsets = [0, 0], sizes = [8, 32], strides = [1, 1]} : vector<8x128xf32> to vector<8x32xf32>
    %627 = arith.negf %626 : vector<8x32xf32>
    %628 = math.exp %627 : vector<8x32xf32>
    %cst_137 = arith.constant 1.000000e+00 : f32
    %629 = vector.broadcast %cst_137 : f32 to vector<8x32xf32>
    %630 = arith.addf %629, %628 : vector<8x32xf32>
    %631 = arith.divf %629, %630 : vector<8x32xf32>
    %632 = vector.extract_strided_slice %625 {offsets = [0, 32], sizes = [8, 32], strides = [1, 1]} : vector<8x128xf32> to vector<8x32xf32>
    %633 = arith.negf %632 : vector<8x32xf32>
    %634 = math.exp %633 : vector<8x32xf32>
    %cst_138 = arith.constant 1.000000e+00 : f32
    %635 = vector.broadcast %cst_138 : f32 to vector<8x32xf32>
    %636 = arith.addf %635, %634 : vector<8x32xf32>
    %637 = arith.divf %635, %636 : vector<8x32xf32>
    %638 = vector.extract_strided_slice %625 {offsets = [0, 64], sizes = [8, 32], strides = [1, 1]} : vector<8x128xf32> to vector<8x32xf32>
    %639 = math.tanh %638 : vector<8x32xf32>
    %640 = vector.extract_strided_slice %625 {offsets = [0, 96], sizes = [8, 32], strides = [1, 1]} : vector<8x128xf32> to vector<8x32xf32>
    %641 = arith.negf %640 : vector<8x32xf32>
    %642 = math.exp %641 : vector<8x32xf32>
    %cst_139 = arith.constant 1.000000e+00 : f32
    %643 = vector.broadcast %cst_139 : f32 to vector<8x32xf32>
    %644 = arith.addf %643, %642 : vector<8x32xf32>
    %645 = arith.divf %643, %644 : vector<8x32xf32>
    %646 = arith.mulf %637, %619 : vector<8x32xf32>
    %647 = arith.mulf %631, %639 : vector<8x32xf32>
    %648 = arith.addf %646, %647 : vector<8x32xf32>
    %649 = math.tanh %648 : vector<8x32xf32>
    %650 = arith.mulf %645, %649 : vector<8x32xf32>
    %651 = arith.truncf %650 : vector<8x32xf32> to vector<8x32xbf16>
    %652 = vector.extract_strided_slice %504 {offsets = [40, 0], sizes = [8, 128], strides = [1, 1]} : vector<64x128xf32> to vector<8x128xf32>
    %cst_140 = arith.constant dense<0.000000e+00> : vector<8x128xf32>
    %653 = tpu.matmul %651, %499, %cst_140 {dimension_numbers = #tpu.dot_dimension_numbers<[1], [0], [0], [1], [0, 0, 1, 1], [], []>} : vector<8x32xbf16>, vector<32x128xbf16>, vector<8x128xf32> -> vector<8x128xf32>
    %654 = arith.addf %652, %653 : vector<8x128xf32>
    %655 = vector.extract_strided_slice %654 {offsets = [0, 0], sizes = [8, 32], strides = [1, 1]} : vector<8x128xf32> to vector<8x32xf32>
    %656 = arith.negf %655 : vector<8x32xf32>
    %657 = math.exp %656 : vector<8x32xf32>
    %cst_141 = arith.constant 1.000000e+00 : f32
    %658 = vector.broadcast %cst_141 : f32 to vector<8x32xf32>
    %659 = arith.addf %658, %657 : vector<8x32xf32>
    %660 = arith.divf %658, %659 : vector<8x32xf32>
    %661 = vector.extract_strided_slice %654 {offsets = [0, 32], sizes = [8, 32], strides = [1, 1]} : vector<8x128xf32> to vector<8x32xf32>
    %662 = arith.negf %661 : vector<8x32xf32>
    %663 = math.exp %662 : vector<8x32xf32>
    %cst_142 = arith.constant 1.000000e+00 : f32
    %664 = vector.broadcast %cst_142 : f32 to vector<8x32xf32>
    %665 = arith.addf %664, %663 : vector<8x32xf32>
    %666 = arith.divf %664, %665 : vector<8x32xf32>
    %667 = vector.extract_strided_slice %654 {offsets = [0, 64], sizes = [8, 32], strides = [1, 1]} : vector<8x128xf32> to vector<8x32xf32>
    %668 = math.tanh %667 : vector<8x32xf32>
    %669 = vector.extract_strided_slice %654 {offsets = [0, 96], sizes = [8, 32], strides = [1, 1]} : vector<8x128xf32> to vector<8x32xf32>
    %670 = arith.negf %669 : vector<8x32xf32>
    %671 = math.exp %670 : vector<8x32xf32>
    %cst_143 = arith.constant 1.000000e+00 : f32
    %672 = vector.broadcast %cst_143 : f32 to vector<8x32xf32>
    %673 = arith.addf %672, %671 : vector<8x32xf32>
    %674 = arith.divf %672, %673 : vector<8x32xf32>
    %675 = arith.mulf %666, %648 : vector<8x32xf32>
    %676 = arith.mulf %660, %668 : vector<8x32xf32>
    %677 = arith.addf %675, %676 : vector<8x32xf32>
    %678 = math.tanh %677 : vector<8x32xf32>
    %679 = arith.mulf %674, %678 : vector<8x32xf32>
    %680 = arith.truncf %679 : vector<8x32xf32> to vector<8x32xbf16>
    %681 = vector.extract_strided_slice %504 {offsets = [48, 0], sizes = [8, 128], strides = [1, 1]} : vector<64x128xf32> to vector<8x128xf32>
    %cst_144 = arith.constant dense<0.000000e+00> : vector<8x128xf32>
    %682 = tpu.matmul %680, %499, %cst_144 {dimension_numbers = #tpu.dot_dimension_numbers<[1], [0], [0], [1], [0, 0, 1, 1], [], []>} : vector<8x32xbf16>, vector<32x128xbf16>, vector<8x128xf32> -> vector<8x128xf32>
    %683 = arith.addf %681, %682 : vector<8x128xf32>
    %684 = vector.extract_strided_slice %683 {offsets = [0, 0], sizes = [8, 32], strides = [1, 1]} : vector<8x128xf32> to vector<8x32xf32>
    %685 = arith.negf %684 : vector<8x32xf32>
    %686 = math.exp %685 : vector<8x32xf32>
    %cst_145 = arith.constant 1.000000e+00 : f32
    %687 = vector.broadcast %cst_145 : f32 to vector<8x32xf32>
    %688 = arith.addf %687, %686 : vector<8x32xf32>
    %689 = arith.divf %687, %688 : vector<8x32xf32>
    %690 = vector.extract_strided_slice %683 {offsets = [0, 32], sizes = [8, 32], strides = [1, 1]} : vector<8x128xf32> to vector<8x32xf32>
    %691 = arith.negf %690 : vector<8x32xf32>
    %692 = math.exp %691 : vector<8x32xf32>
    %cst_146 = arith.constant 1.000000e+00 : f32
    %693 = vector.broadcast %cst_146 : f32 to vector<8x32xf32>
    %694 = arith.addf %693, %692 : vector<8x32xf32>
    %695 = arith.divf %693, %694 : vector<8x32xf32>
    %696 = vector.extract_strided_slice %683 {offsets = [0, 64], sizes = [8, 32], strides = [1, 1]} : vector<8x128xf32> to vector<8x32xf32>
    %697 = math.tanh %696 : vector<8x32xf32>
    %698 = vector.extract_strided_slice %683 {offsets = [0, 96], sizes = [8, 32], strides = [1, 1]} : vector<8x128xf32> to vector<8x32xf32>
    %699 = arith.negf %698 : vector<8x32xf32>
    %700 = math.exp %699 : vector<8x32xf32>
    %cst_147 = arith.constant 1.000000e+00 : f32
    %701 = vector.broadcast %cst_147 : f32 to vector<8x32xf32>
    %702 = arith.addf %701, %700 : vector<8x32xf32>
    %703 = arith.divf %701, %702 : vector<8x32xf32>
    %704 = arith.mulf %695, %677 : vector<8x32xf32>
    %705 = arith.mulf %689, %697 : vector<8x32xf32>
    %706 = arith.addf %704, %705 : vector<8x32xf32>
    %707 = math.tanh %706 : vector<8x32xf32>
    %708 = arith.mulf %703, %707 : vector<8x32xf32>
    %709 = arith.truncf %708 : vector<8x32xf32> to vector<8x32xbf16>
    %710 = vector.extract_strided_slice %504 {offsets = [56, 0], sizes = [8, 128], strides = [1, 1]} : vector<64x128xf32> to vector<8x128xf32>
    %cst_148 = arith.constant dense<0.000000e+00> : vector<8x128xf32>
    %711 = tpu.matmul %709, %499, %cst_148 {dimension_numbers = #tpu.dot_dimension_numbers<[1], [0], [0], [1], [0, 0, 1, 1], [], []>} : vector<8x32xbf16>, vector<32x128xbf16>, vector<8x128xf32> -> vector<8x128xf32>
    %712 = arith.addf %710, %711 : vector<8x128xf32>
    %713 = vector.extract_strided_slice %712 {offsets = [0, 0], sizes = [8, 32], strides = [1, 1]} : vector<8x128xf32> to vector<8x32xf32>
    %714 = arith.negf %713 : vector<8x32xf32>
    %715 = math.exp %714 : vector<8x32xf32>
    %cst_149 = arith.constant 1.000000e+00 : f32
    %716 = vector.broadcast %cst_149 : f32 to vector<8x32xf32>
    %717 = arith.addf %716, %715 : vector<8x32xf32>
    %718 = arith.divf %716, %717 : vector<8x32xf32>
    %719 = vector.extract_strided_slice %712 {offsets = [0, 32], sizes = [8, 32], strides = [1, 1]} : vector<8x128xf32> to vector<8x32xf32>
    %720 = arith.negf %719 : vector<8x32xf32>
    %721 = math.exp %720 : vector<8x32xf32>
    %cst_150 = arith.constant 1.000000e+00 : f32
    %722 = vector.broadcast %cst_150 : f32 to vector<8x32xf32>
    %723 = arith.addf %722, %721 : vector<8x32xf32>
    %724 = arith.divf %722, %723 : vector<8x32xf32>
    %725 = vector.extract_strided_slice %712 {offsets = [0, 64], sizes = [8, 32], strides = [1, 1]} : vector<8x128xf32> to vector<8x32xf32>
    %726 = math.tanh %725 : vector<8x32xf32>
    %727 = vector.extract_strided_slice %712 {offsets = [0, 96], sizes = [8, 32], strides = [1, 1]} : vector<8x128xf32> to vector<8x32xf32>
    %728 = arith.negf %727 : vector<8x32xf32>
    %729 = math.exp %728 : vector<8x32xf32>
    %cst_151 = arith.constant 1.000000e+00 : f32
    %730 = vector.broadcast %cst_151 : f32 to vector<8x32xf32>
    %731 = arith.addf %730, %729 : vector<8x32xf32>
    %732 = arith.divf %730, %731 : vector<8x32xf32>
    %733 = arith.mulf %724, %706 : vector<8x32xf32>
    %734 = arith.mulf %718, %726 : vector<8x32xf32>
    %735 = arith.addf %733, %734 : vector<8x32xf32>
    %736 = math.tanh %735 : vector<8x32xf32>
    %737 = arith.mulf %732, %736 : vector<8x32xf32>
    %738 = arith.truncf %737 : vector<8x32xf32> to vector<8x32xbf16>
    %c0_152 = arith.constant 0 : index
    %c0_153 = arith.constant 0 : index
    %739 = vector.load %arg10[%c0_152, %c0_153] : memref<32x128xbf16, #tpu.memory_space<vmem>>, vector<32x128xbf16>
    %cst_154 = arith.constant dense<0.000000e+00> : vector<8x128xf32>
    %740 = tpu.matmul %738, %739, %cst_154 {dimension_numbers = #tpu.dot_dimension_numbers<[1], [0], [0], [1], [0, 0, 1, 1], [], []>} : vector<8x32xbf16>, vector<32x128xbf16>, vector<8x128xf32> -> vector<8x128xf32>
    %c0_155 = arith.constant 0 : index
    %c0_156 = arith.constant 0 : index
    %741 = vector.load %arg11[%c0_155, %c0_156] : memref<1x128xf32, #tpu.memory_space<vmem>>, vector<1x128xf32>
    %742 = vector.broadcast %741 : vector<1x128xf32> to vector<8x128xf32>
    %743 = arith.addf %740, %742 : vector<8x128xf32>
    %c0_157 = arith.constant 0 : index
    %c0_158 = arith.constant 0 : index
    %744 = vector.load %arg12[%c0_157, %c0_158] : memref<8x128xf32, #tpu.memory_space<vmem>>, vector<8x128xf32>
    tpu.vector_store %arg12[%c0_157, %c0_158], %743 {strides = array<i32>} : memref<8x128xf32, #tpu.memory_space<vmem>>, vector<8x128xf32>,
    return
  }
}

</mosaic_0001>

<llo_original>
// kernel: lstm_classifier_forward.1
$region0: #{lstm_classifier_forward.1}
  #allocation0 [shape = 'u32[]', space=smem, size = 0x4, offset = 0x4, fixed_abs, tag = 'smem constant byte address 0x4 - core index']
  #allocation1 [shape = 'u32[72,128]{1,0:T(1,128)}', space=vmem, size = 0x9000, scoped, tag = 'internal scratch']
  #allocation2 [shape = 'bf16[64,32]{1,0:T(8,128)(2,1)}', space=vmem, size = 0x4000, scoped, tag = 'scratch operand']
  %s0 = inlined_call_operand.vmem [shape: bf16[64,128], index: 0, kind: input, shape index: {}]
  %s1 = inlined_call_operand.vmem [shape: bf16[128,128], index: 1, kind: input, shape index: {}]
  %s2 = inlined_call_operand.vmem [shape: bf16[32,128], index: 2, kind: input, shape index: {}]
  %s3 = inlined_call_operand.vmem [shape: f32[1,128], index: 3, kind: input, shape index: {}]
  %s4 = inlined_call_operand.vmem [shape: bf16[32,128], index: 4, kind: input, shape index: {}]
  %s5 = inlined_call_operand.vmem [shape: bf16[32,128], index: 5, kind: input, shape index: {}]
  %s6 = inlined_call_operand.vmem [shape: f32[1,128], index: 6, kind: input, shape index: {}]
  %s7 = inlined_call_operand.vmem [shape: bf16[32,128], index: 7, kind: input, shape index: {}]
  %s8 = inlined_call_operand.vmem [shape: bf16[32,128], index: 8, kind: input, shape index: {}]
  %s9 = inlined_call_operand.vmem [shape: f32[1,128], index: 9, kind: input, shape index: {}]
  %s10 = inlined_call_operand.vmem [shape: bf16[32,128], index: 10, kind: input, shape index: {}]
  %s11 = inlined_call_operand.vmem [shape: f32[1,128], index: 11, kind: input, shape index: {}]
  %s12 = inlined_call_operand.vmem [shape: f32[8,128], index: 12, kind: output, shape index: {}]
  %s13 = sld [smem:[#allocation0]]
  $region58: #{lstm_classifier_forward.1} parent=0
    _
  %s15 = ssub.s32 1, %s13
  %s16 = scalar_select 0, %s15, %s13
  // Predicated region
  $region2: #{lstm_classifier_forward.1} parent=0 // pred_check
    _
  $region3: #{lstm_classifier_forward.1} parent=0 // pred_check_branch
    %18 = sbr.rel (0) target = $region5
  $region4: #{lstm_classifier_forward.1} parent=0 // pred_region
    _
  $region5: #{lstm_classifier_forward.1} parent=0 // pred_fallthru
    _
  // Predicated region
  $region6: #{lstm_classifier_forward.1} parent=0 // pred_check
    _
  $region7: #{lstm_classifier_forward.1} parent=0 // pred_check_branch
    %20 = sbr.rel (0) target = $region9
  $region8: #{lstm_classifier_forward.1} parent=0 // pred_region
    _
  $region9: #{lstm_classifier_forward.1} parent=0 // pred_fallthru
    _
  // Predicated region
  $region10: #{lstm_classifier_forward.1} parent=0 // pred_check
    _
  $region11: #{lstm_classifier_forward.1} parent=0 // pred_check_branch
    %22 = sbr.rel (0) target = $region13
  $region12: #{lstm_classifier_forward.1} parent=0 // pred_region
    _
  $region13: #{lstm_classifier_forward.1} parent=0 // pred_fallthru
    _
  // Predicated region
  $region14: #{lstm_classifier_forward.1} parent=0 // pred_check
    _
  $region15: #{lstm_classifier_forward.1} parent=0 // pred_check_branch
    %24 = sbr.rel (0) target = $region17
  $region16: #{lstm_classifier_forward.1} parent=0 // pred_region
    _
  $region17: #{lstm_classifier_forward.1} parent=0 // pred_fallthru
    _
  // Predicated region
  $region18: #{lstm_classifier_forward.1} parent=0 // pred_check
    _
  $region19: #{lstm_classifier_forward.1} parent=0 // pred_check_branch
    %26 = sbr.rel (0) target = $region21
  $region20: #{lstm_classifier_forward.1} parent=0 // pred_region
    _
  $region21: #{lstm_classifier_forward.1} parent=0 // pred_fallthru
    _
  // Predicated region
  $region22: #{lstm_classifier_forward.1} parent=0 // pred_check
    _
  $region23: #{lstm_classifier_forward.1} parent=0 // pred_check_branch
    %28 = sbr.rel (0) target = $region25
  $region24: #{lstm_classifier_forward.1} parent=0 // pred_region
    _
  $region25: #{lstm_classifier_forward.1} parent=0 // pred_fallthru
    _
  // Predicated region
  $region26: #{lstm_classifier_forward.1} parent=0 // pred_check
    _
  $region27: #{lstm_classifier_forward.1} parent=0 // pred_check_branch
    %30 = sbr.rel (0) target = $region29
  $region28: #{lstm_classifier_forward.1} parent=0 // pred_region
    _
  $region29: #{lstm_classifier_forward.1} parent=0 // pred_fallthru
    _
  // Predicated region
  $region30: #{lstm_classifier_forward.1} parent=0 // pred_check
    _
  $region31: #{lstm_classifier_forward.1} parent=0 // pred_check_branch
    %32 = sbr.rel (0) target = $region33
  $region32: #{lstm_classifier_forward.1} parent=0 // pred_region
    _
  $region33: #{lstm_classifier_forward.1} parent=0 // pred_fallthru
    _
  // Predicated region
  $region34: #{lstm_classifier_forward.1} parent=0 // pred_check
    _
  $region35: #{lstm_classifier_forward.1} parent=0 // pred_check_branch
    %34 = sbr.rel (0) target = $region37
  $region36: #{lstm_classifier_forward.1} parent=0 // pred_region
    _
  $region37: #{lstm_classifier_forward.1} parent=0 // pred_fallthru
    _
  // Predicated region
  $region38: #{lstm_classifier_forward.1} parent=0 // pred_check
    _
  $region39: #{lstm_classifier_forward.1} parent=0 // pred_check_branch
    %36 = sbr.rel (0) target = $region41
  $region40: #{lstm_classifier_forward.1} parent=0 // pred_region
    _
  $region41: #{lstm_classifier_forward.1} parent=0 // pred_fallthru
    _
  // Predicated region
  $region42: #{lstm_classifier_forward.1} parent=0 // pred_check
    _
  $region43: #{lstm_classifier_forward.1} parent=0 // pred_check_branch
    %38 = sbr.rel (0) target = $region45
  $region44: #{lstm_classifier_forward.1} parent=0 // pred_region
    _
  $region45: #{lstm_classifier_forward.1} parent=0 // pred_fallthru
    _
  // Predicated region
  $region46: #{lstm_classifier_forward.1} parent=0 // pred_check
    _
  $region47: #{lstm_classifier_forward.1} parent=0 // pred_check_branch
    %40 = sbr.rel (0) target = $region49
  $region48: #{lstm_classifier_forward.1} parent=0 // pred_region
    _
  $region49: #{lstm_classifier_forward.1} parent=0 // pred_fallthru
    _
  %v42 = vld [vmem:[%s1] sm:$0xf]
  %v43 = vld [vmem:[%s1 + $0x4] sm:$0xf]
  %v44 = vld [vmem:[%s1 + $0x8] sm:$0xf]
  %v45 = vld [vmem:[%s1 + $0xc] sm:$0xf]
  %v46 = vld [vmem:[%s1 + $0x10] sm:$0xf]
  %v47 = vld [vmem:[%s1 + $0x14] sm:$0xf]
  %v48 = vld [vmem:[%s1 + $0x18] sm:$0xf]
  %v49 = vld [vmem:[%s1 + $0x1c] sm:$0xf]
  %v50 = vld [vmem:[%s1 + $0x20] sm:$0xf]
  %v51 = vld [vmem:[%s1 + $0x24] sm:$0xf]
  %v52 = vld [vmem:[%s1 + $0x28] sm:$0xf]
  %v53 = vld [vmem:[%s1 + $0x2c] sm:$0xf]
  %v54 = vld [vmem:[%s1 + $0x30] sm:$0xf]
  %v55 = vld [vmem:[%s1 + $0x34] sm:$0xf]
  %v56 = vld [vmem:[%s1 + $0x38] sm:$0xf]
  %v57 = vld [vmem:[%s1 + $0x3c] sm:$0xf]
  %v58 = vld [vmem:[%s2] sm:$0xf]
  %v59 = vld [vmem:[%s2 + $0x4] sm:$0xf]
  %v60 = vld [vmem:[%s2 + $0x8] sm:$0xf]
  %v61 = vld [vmem:[%s2 + $0xc] sm:$0xf]
  %v62 = vld [vmem:[%s3] sm:$0x1]
  %v63 = vld [vmem:[%s0] sm:$0xf]
  %v64 = vld [vmem:[%s0 + $0x4] sm:$0xf]
  %v65 = vld [vmem:[%s0 + $0x8] sm:$0xf]
  %v66 = vld [vmem:[%s0 + $0xc] sm:$0xf]
  %v67 = vld [vmem:[%s0 + $0x10] sm:$0xf]
  %v68 = vld [vmem:[%s0 + $0x14] sm:$0xf]
  %v69 = vld [vmem:[%s0 + $0x18] sm:$0xf]
  %v70 = vld [vmem:[%s0 + $0x1c] sm:$0xf]
  %v72 = vperm.slane %v62, 0
  %v82 = vunpack.c.l.b16 %v63
  %v83 = vunpack.c.l.b16 %v64
  %v84 = vunpack.c.l.b16 %v65
  %v85 = vunpack.c.l.b16 %v66
  %v86 = vunpack.c.l.b16 %v67
  %v87 = vunpack.c.l.b16 %v68
  %v88 = vunpack.c.l.b16 %v69
  %v89 = vunpack.c.l.b16 %v70
  %v90 = vpack.c.b16 %v83, %v82
  %v91 = vpack.c.b16 %v85, %v84
  %v92 = vpack.c.b16 %v87, %v86
  %v93 = vpack.c.b16 %v89, %v88
  %v114 = vunpack.c.l.b16 %v42
  %v115 = vunpack.c.l.b16 %v43
  %v116 = vunpack.c.l.b16 %v44
  %v117 = vunpack.c.l.b16 %v45
  %v118 = vunpack.c.l.b16 %v46
  %v119 = vunpack.c.l.b16 %v47
  %v120 = vunpack.c.l.b16 %v48
  %v121 = vunpack.c.l.b16 %v49
  %v122 = vunpack.c.l.b16 %v50
  %v123 = vunpack.c.l.b16 %v51
  %v124 = vunpack.c.l.b16 %v52
  %v125 = vunpack.c.l.b16 %v53
  %v126 = vunpack.c.l.b16 %v54
  %v127 = vunpack.c.l.b16 %v55
  %v128 = vunpack.c.l.b16 %v56
  %v129 = vunpack.c.l.b16 %v57
  %v130 = vpack.c.b16 %v115, %v114
  %v131 = vpack.c.b16 %v117, %v116
  %v132 = vpack.c.b16 %v119, %v118
  %v133 = vpack.c.b16 %v121, %v120
  %v134 = vpack.c.b16 %v123, %v122
  %v135 = vpack.c.b16 %v125, %v124
  %v136 = vpack.c.b16 %v127, %v126
  %v137 = vpack.c.b16 %v129, %v128
  %146 = vmatpush.bf16.msra.mxu0 %v137
  %147 = vmatpush.bf16.msra.mxu0 %v136
  %148 = vmatpush.bf16.msra.mxu0 %v135
  %149 = vmatpush.bf16.msra.mxu0 %v134
  %150 = vmatpush.bf16.msra.mxu0 %v133
  %151 = vmatpush.bf16.msra.mxu0 %v132
  %152 = vmatpush.bf16.msra.mxu0 %v131
  %153 = vmatpush.bf16.msra.mxu0 %v130
  %154 = vmatmul.bf16.gmra.mxu0 %v90
  %v155 = vpop.f32.mrf.mxu0
  %v156 = vadd.f32 %v72, %v155
  %v157 = vpop.f32.mrf.mxu0
  %v158 = vadd.f32 %v72, %v157
  %159 = vmatmul.bf16.gmra.mxu0 %v91
  %v160 = vpop.f32.mrf.mxu0
  %v161 = vadd.f32 %v72, %v160
  %v162 = vpop.f32.mrf.mxu0
  %v163 = vadd.f32 %v72, %v162
  %164 = vmatmul.bf16.gmra.mxu0 %v92
  %v165 = vpop.f32.mrf.mxu0
  %v166 = vadd.f32 %v72, %v165
  %v167 = vpop.f32.mrf.mxu0
  %v168 = vadd.f32 %v72, %v167
  %169 = vmatmul.bf16.gmra.mxu0 %v93
  %v170 = vpop.f32.mrf.mxu0
  %v171 = vadd.f32 %v72, %v170
  %v172 = vpop.f32.mrf.mxu0
  %v173 = vadd.f32 %v72, %v172
  %174 = vdwg.mxu0
  %v179 = vunpack.c.l.b16 %v58
  %v180 = vunpack.c.l.b16 %v59
  %v181 = vunpack.c.l.b16 %v60
  %v182 = vunpack.c.l.b16 %v61
  %v183 = vpack.c.b16 %v180, %v179
  %v184 = vpack.c.b16 %v182, %v181
  %vm187 = vcmask 261120
  %v189 = vsel %vm187, 0, 0
  %191 = vmatpush.bf16.msra.mxu0 0
  %192 = vmatpush.bf16.msra.mxu0 0
  %193 = vmatpush.bf16.msra.mxu0 0
  %194 = vmatpush.bf16.msra.mxu0 0
  %195 = vmatpush.bf16.msra.mxu0 0
  %196 = vmatpush.bf16.msra.mxu0 0
  %197 = vmatpush.bf16.msra.mxu0 %v184
  %198 = vmatpush.bf16.msra.mxu0 %v183
  %199 = vmatmul.bf16.gmra.mxu0 %v189
  %v200 = vpop.f32.mrf.mxu0
  %v201 = vadd.f32 0.0, %v200
  %v202 = vpop.f32.mrf.mxu0
  %203 = vdwg.mxu0
  %v204 = vadd.f32 %v156, %v201
  %v205 = vxor.u32 %v204, 2147483648
  %v206 = vmul.f32 %v205, 1.442695
  %v207 = vpow.pop %v206
  %v208 = vadd.f32 %v207, 1.0
  %v209 = vrcp.pop %v208
  %v210 = vmul.f32 %v208, %v209
  %v211 = vsub.f32 1.0, %v210
  %v212 = vmul.f32 %v209, %v211
  %v213 = vadd.f32 %v209, %v212
  %vm214 = vweird.f32 %v208
  %vm215 = vweird.f32 %v209
  %vm216 = vmor %vm214, %vm215
  %v217 = vsel %vm216, %v209, %v213
  %v218 = vand.u32 2147483647, %v208
  %vm219 = vcmp.eq.f32.partialorder %v218, 8.507059e+37
  %v220 = vand.u32 %v208, 2147483648
  %v221 = vor.u32 1.1754944e-38, %v220
  %v222 = vsel %vm219, %v221, %v217
  %v223 = vmul.f32 1.0, %v222
  %v224 = vtanh.pop %v204
  %v225 = vmul.f32 %v223, 0.0
  %227 = vrot.lane.b32.xlu0 %v224, 64
  %v228 = vpop.permute.xlu0 %227
  %v230 = vmul.f32 %v223, %v228
  %232 = vrot.lane.b32.xlu0 %v230, 32
  %v233 = vpop.permute.xlu0 %232
  %v235 = vadd.f32 %v225, %v233
  %v236 = vtanh.pop %v235
  %238 = vrot.lane.b32.xlu0 %v236, 64
  %v239 = vpop.permute.xlu0 %238
  %v241 = vmul.f32 %v223, %v239
  %v242 = vpack.c.bf16 %v241, %v241
  %244 = vrot.lane.b32.xlu0 %v242, 32
  %v245 = vpop.permute.xlu0 %244
  %vm247 = vcmask 257024
  %248 = vst.msk [vmem:[#allocation2] sm:$0xf] %vm247, %v245
  %v249 = vunpack.c.l.b16 %v242
  %v250 = vpack.c.b16 %v249, %v249
  %251 = vrot.lane.b32.xlu0 %v250, 32
  %v252 = vpop.permute.xlu0 %251
  %v254 = vsel %vm187, %v252, 0
  %256 = vmatpush.bf16.msra.mxu0 0
  %257 = vmatpush.bf16.msra.mxu0 0
  %258 = vmatpush.bf16.msra.mxu0 0
  %259 = vmatpush.bf16.msra.mxu0 0
  %260 = vmatpush.bf16.msra.mxu0 0
  %261 = vmatpush.bf16.msra.mxu0 0
  %262 = vmatpush.bf16.msra.mxu0 %v184
  %263 = vmatpush.bf16.msra.mxu0 %v183
  %264 = vmatmul.bf16.gmra.mxu0 %v254
  %v265 = vpop.f32.mrf.mxu0
  %v266 = vadd.f32 0.0, %v265
  %v267 = vpop.f32.mrf.mxu0
  %268 = vdwg.mxu0
  %v269 = vadd.f32 %v158, %v266
  %v270 = vxor.u32 %v269, 2147483648
  %v271 = vmul.f32 %v270, 1.442695
  %v272 = vpow.pop %v271
  %v273 = vadd.f32 %v272, 1.0
  %v274 = vrcp.pop %v273
  %v275 = vmul.f32 %v273, %v274
  %v276 = vsub.f32 1.0, %v275
  %v277 = vmul.f32 %v274, %v276
  %v278 = vadd.f32 %v274, %v277
  %vm279 = vweird.f32 %v273
  %vm280 = vweird.f32 %v274
  %vm281 = vmor %vm279, %vm280
  %v282 = vsel %vm281, %v274, %v278
  %v283 = vand.u32 2147483647, %v273
  %vm284 = vcmp.eq.f32.partialorder %v283, 8.507059e+37
  %v285 = vand.u32 %v273, 2147483648
  %v286 = vor.u32 1.1754944e-38, %v285
  %v287 = vsel %vm284, %v286, %v282
  %v288 = vmul.f32 1.0, %v287
  %v289 = vtanh.pop %v269
  %v290 = vmul.f32 %v288, %v235
  %292 = vrot.lane.b32.xlu0 %v289, 64
  %v293 = vpop.permute.xlu0 %292
  %v295 = vmul.f32 %v288, %v293
  %297 = vrot.lane.b32.xlu0 %v295, 32
  %v298 = vpop.permute.xlu0 %297
  %v300 = vadd.f32 %v290, %v298
  %v301 = vtanh.pop %v300
  %303 = vrot.lane.b32.xlu0 %v301, 64
  %v304 = vpop.permute.xlu0 %303
  %v306 = vmul.f32 %v288, %v304
  %v307 = vpack.c.bf16 %v306, %v306
  %309 = vrot.lane.b32.xlu0 %v307, 32
  %v310 = vpop.permute.xlu0 %309
  %312 = vst.msk [vmem:[#allocation2 + $0x4] sm:$0xf] %vm247, %v310
  %v313 = vunpack.c.l.b16 %v307
  %v314 = vpack.c.b16 %v313, %v313
  %315 = vrot.lane.b32.xlu0 %v314, 32
  %v316 = vpop.permute.xlu0 %315
  %v318 = vsel %vm187, %v316, 0
  %320 = vmatpush.bf16.msra.mxu0 0
  %321 = vmatpush.bf16.msra.mxu0 0
  %322 = vmatpush.bf16.msra.mxu0 0
  %323 = vmatpush.bf16.msra.mxu0 0
  %324 = vmatpush.bf16.msra.mxu0 0
  %325 = vmatpush.bf16.msra.mxu0 0
  %326 = vmatpush.bf16.msra.mxu0 %v184
  %327 = vmatpush.bf16.msra.mxu0 %v183
  %328 = vmatmul.bf16.gmra.mxu0 %v318
  %v329 = vpop.f32.mrf.mxu0
  %v330 = vadd.f32 0.0, %v329
  %v331 = vpop.f32.mrf.mxu0
  %332 = vdwg.mxu0
  %v333 = vadd.f32 %v161, %v330
  %v334 = vxor.u32 %v333, 2147483648
  %v335 = vmul.f32 %v334, 1.442695
  %v336 = vpow.pop %v335
  %v337 = vadd.f32 %v336, 1.0
  %v338 = vrcp.pop %v337
  %v339 = vmul.f32 %v337, %v338
  %v340 = vsub.f32 1.0, %v339
  %v341 = vmul.f32 %v338, %v340
  %v342 = vadd.f32 %v338, %v341
  %vm343 = vweird.f32 %v337
  %vm344 = vweird.f32 %v338
  %vm345 = vmor %vm343, %vm344
  %v346 = vsel %vm345, %v338, %v342
  %v347 = vand.u32 2147483647, %v337
  %vm348 = vcmp.eq.f32.partialorder %v347, 8.507059e+37
  %v349 = vand.u32 %v337, 2147483648
  %v350 = vor.u32 1.1754944e-38, %v349
  %v351 = vsel %vm348, %v350, %v346
  %v352 = vmul.f32 1.0, %v351
  %v353 = vtanh.pop %v333
  %v354 = vmul.f32 %v352, %v300
  %356 = vrot.lane.b32.xlu0 %v353, 64
  %v357 = vpop.permute.xlu0 %356
  %v359 = vmul.f32 %v352, %v357
  %361 = vrot.lane.b32.xlu0 %v359, 32
  %v362 = vpop.permute.xlu0 %361
  %v364 = vadd.f32 %v354, %v362
  %v365 = vtanh.pop %v364
  %367 = vrot.lane.b32.xlu0 %v365, 64
  %v368 = vpop.permute.xlu0 %367
  %v370 = vmul.f32 %v352, %v368
  %v371 = vpack.c.bf16 %v370, %v370
  %373 = vrot.lane.b32.xlu0 %v371, 32
  %v374 = vpop.permute.xlu0 %373
  %376 = vst.msk [vmem:[#allocation2 + $0x8] sm:$0xf] %vm247, %v374
  %v377 = vunpack.c.l.b16 %v371
  %v378 = vpack.c.b16 %v377, %v377
  %379 = vrot.lane.b32.xlu0 %v378, 32
  %v380 = vpop.permute.xlu0 %379
  %v382 = vsel %vm187, %v380, 0
  %384 = vmatpush.bf16.msra.mxu0 0
  %385 = vmatpush.bf16.msra.mxu0 0
  %386 = vmatpush.bf16.msra.mxu0 0
  %387 = vmatpush.bf16.msra.mxu0 0
  %388 = vmatpush.bf16.msra.mxu0 0
  %389 = vmatpush.bf16.msra.mxu0 0
  %390 = vmatpush.bf16.msra.mxu0 %v184
  %391 = vmatpush.bf16.msra.mxu0 %v183
  %392 = vmatmul.bf16.gmra.mxu0 %v382
  %v393 = vpop.f32.mrf.mxu0
  %v394 = vadd.f32 0.0, %v393
  %v395 = vpop.f32.mrf.mxu0
  %396 = vdwg.mxu0
  %v397 = vadd.f32 %v163, %v394
  %v398 = vxor.u32 %v397, 2147483648
  %v399 = vmul.f32 %v398, 1.442695
  %v400 = vpow.pop %v399
  %v401 = vadd.f32 %v400, 1.0
  %v402 = vrcp.pop %v401
  %v403 = vmul.f32 %v401, %v402
  %v404 = vsub.f32 1.0, %v403
  %v405 = vmul.f32 %v402, %v404
  %v406 = vadd.f32 %v402, %v405
  %vm407 = vweird.f32 %v401
  %vm408 = vweird.f32 %v402
  %vm409 = vmor %vm407, %vm408
  %v410 = vsel %vm409, %v402, %v406
  %v411 = vand.u32 2147483647, %v401
  %vm412 = vcmp.eq.f32.partialorder %v411, 8.507059e+37
  %v413 = vand.u32 %v401, 2147483648
  %v414 = vor.u32 1.1754944e-38, %v413
  %v415 = vsel %vm412, %v414, %v410
  %v416 = vmul.f32 1.0, %v415
  %v417 = vtanh.pop %v397
  %v418 = vmul.f32 %v416, %v364
  %420 = vrot.lane.b32.xlu0 %v417, 64
  %v421 = vpop.permute.xlu0 %420
  %v423 = vmul.f32 %v416, %v421
  %425 = vrot.lane.b32.xlu0 %v423, 32
  %v426 = vpop.permute.xlu0 %425
  %v428 = vadd.f32 %v418, %v426
  %v429 = vtanh.pop %v428
  %431 = vrot.lane.b32.xlu0 %v429, 64
  %v432 = vpop.permute.xlu0 %431
  %v434 = vmul.f32 %v416, %v432
  %v435 = vpack.c.bf16 %v434, %v434
  %437 = vrot.lane.b32.xlu0 %v435, 32
  %v438 = vpop.permute.xlu0 %437
  %440 = vst.msk [vmem:[#allocation2 + $0xc] sm:$0xf] %vm247, %v438
  %v441 = vunpack.c.l.b16 %v435
  %v442 = vpack.c.b16 %v441, %v441
  %443 = vrot.lane.b32.xlu0 %v442, 32
  %v444 = vpop.permute.xlu0 %443
  %v446 = vsel %vm187, %v444, 0
  %448 = vmatpush.bf16.msra.mxu0 0
  %449 = vmatpush.bf16.msra.mxu0 0
  %450 = vmatpush.bf16.msra.mxu0 0
  %451 = vmatpush.bf16.msra.mxu0 0
  %452 = vmatpush.bf16.msra.mxu0 0
  %453 = vmatpush.bf16.msra.mxu0 0
  %454 = vmatpush.bf16.msra.mxu0 %v184
  %455 = vmatpush.bf16.msra.mxu0 %v183
  %456 = vmatmul.bf16.gmra.mxu0 %v446
  %v457 = vpop.f32.mrf.mxu0
  %v458 = vadd.f32 0.0, %v457
  %v459 = vpop.f32.mrf.mxu0
  %460 = vdwg.mxu0
  %v461 = vadd.f32 %v166, %v458
  %v462 = vxor.u32 %v461, 2147483648
  %v463 = vmul.f32 %v462, 1.442695
  %v464 = vpow.pop %v463
  %v465 = vadd.f32 %v464, 1.0
  %v466 = vrcp.pop %v465
  %v467 = vmul.f32 %v465, %v466
  %v468 = vsub.f32 1.0, %v467
  %v469 = vmul.f32 %v466, %v468
  %v470 = vadd.f32 %v466, %v469
  %vm471 = vweird.f32 %v465
  %vm472 = vweird.f32 %v466
  %vm473 = vmor %vm471, %vm472
  %v474 = vsel %vm473, %v466, %v470
  %v475 = vand.u32 2147483647, %v465
  %vm476 = vcmp.eq.f32.partialorder %v475, 8.507059e+37
  %v477 = vand.u32 %v465, 2147483648
  %v478 = vor.u32 1.1754944e-38, %v477
  %v479 = vsel %vm476, %v478, %v474
  %v480 = vmul.f32 1.0, %v479
  %v481 = vtanh.pop %v461
  %v482 = vmul.f32 %v480, %v428
  %484 = vrot.lane.b32.xlu0 %v481, 64
  %v485 = vpop.permute.xlu0 %484
  %v487 = vmul.f32 %v480, %v485
  %489 = vrot.lane.b32.xlu0 %v487, 32
  %v490 = vpop.permute.xlu0 %489
  %v492 = vadd.f32 %v482, %v490
  %v493 = vtanh.pop %v492
  %495 = vrot.lane.b32.xlu0 %v493, 64
  %v496 = vpop.permute.xlu0 %495
  %v498 = vmul.f32 %v480, %v496
  %v499 = vpack.c.bf16 %v498, %v498
  %501 = vrot.lane.b32.xlu0 %v499, 32
  %v502 = vpop.permute.xlu0 %501
  %504 = vst.msk [vmem:[#allocation2 + $0x10] sm:$0xf] %vm247, %v502
  %v505 = vunpack.c.l.b16 %v499
  %v506 = vpack.c.b16 %v505, %v505
  %507 = vrot.lane.b32.xlu0 %v506, 32
  %v508 = vpop.permute.xlu0 %507
  %v510 = vsel %vm187, %v508, 0
  %512 = vmatpush.bf16.msra.mxu0 0
  %513 = vmatpush.bf16.msra.mxu0 0
  %514 = vmatpush.bf16.msra.mxu0 0
  %515 = vmatpush.bf16.msra.mxu0 0
  %516 = vmatpush.bf16.msra.mxu0 0
  %517 = vmatpush.bf16.msra.mxu0 0
  %518 = vmatpush.bf16.msra.mxu0 %v184
  %519 = vmatpush.bf16.msra.mxu0 %v183
  %520 = vmatmul.bf16.gmra.mxu0 %v510
  %v521 = vpop.f32.mrf.mxu0
  %v522 = vadd.f32 0.0, %v521
  %v523 = vpop.f32.mrf.mxu0
  %524 = vdwg.mxu0
  %v525 = vadd.f32 %v168, %v522
  %v526 = vxor.u32 %v525, 2147483648
  %v527 = vmul.f32 %v526, 1.442695
  %v528 = vpow.pop %v527
  %v529 = vadd.f32 %v528, 1.0
  %v530 = vrcp.pop %v529
  %v531 = vmul.f32 %v529, %v530
  %v532 = vsub.f32 1.0, %v531
  %v533 = vmul.f32 %v530, %v532
  %v534 = vadd.f32 %v530, %v533
  %vm535 = vweird.f32 %v529
  %vm536 = vweird.f32 %v530
  %vm537 = vmor %vm535, %vm536
  %v538 = vsel %vm537, %v530, %v534
  %v539 = vand.u32 2147483647, %v529
  %vm540 = vcmp.eq.f32.partialorder %v539, 8.507059e+37
  %v541 = vand.u32 %v529, 2147483648
  %v542 = vor.u32 1.1754944e-38, %v541
  %v543 = vsel %vm540, %v542, %v538
  %v544 = vmul.f32 1.0, %v543
  %v545 = vtanh.pop %v525
  %v546 = vmul.f32 %v544, %v492
  %548 = vrot.lane.b32.xlu0 %v545, 64
  %v549 = vpop.permute.xlu0 %548
  %v551 = vmul.f32 %v544, %v549
  %553 = vrot.lane.b32.xlu0 %v551, 32
  %v554 = vpop.permute.xlu0 %553
  %v556 = vadd.f32 %v546, %v554
  %v557 = vtanh.pop %v556
  %559 = vrot.lane.b32.xlu0 %v557, 64
  %v560 = vpop.permute.xlu0 %559
  %v562 = vmul.f32 %v544, %v560
  %v563 = vpack.c.bf16 %v562, %v562
  %565 = vrot.lane.b32.xlu0 %v563, 32
  %v566 = vpop.permute.xlu0 %565
  %568 = vst.msk [vmem:[#allocation2 + $0x14] sm:$0xf] %vm247, %v566
  %v569 = vunpack.c.l.b16 %v563
  %v570 = vpack.c.b16 %v569, %v569
  %571 = vrot.lane.b32.xlu0 %v570, 32
  %v572 = vpop.permute.xlu0 %571
  %v574 = vsel %vm187, %v572, 0
  %576 = vmatpush.bf16.msra.mxu0 0
  %577 = vmatpush.bf16.msra.mxu0 0
  %578 = vmatpush.bf16.msra.mxu0 0
  %579 = vmatpush.bf16.msra.mxu0 0
  %580 = vmatpush.bf16.msra.mxu0 0
  %581 = vmatpush.bf16.msra.mxu0 0
  %582 = vmatpush.bf16.msra.mxu0 %v184
  %583 = vmatpush.bf16.msra.mxu0 %v183
  %584 = vmatmul.bf16.gmra.mxu0 %v574
  %v585 = vpop.f32.mrf.mxu0
  %v586 = vadd.f32 0.0, %v585
  %v587 = vpop.f32.mrf.mxu0
  %588 = vdwg.mxu0
  %v589 = vadd.f32 %v171, %v586
  %v590 = vxor.u32 %v589, 2147483648
  %v591 = vmul.f32 %v590, 1.442695
  %v592 = vpow.pop %v591
  %v593 = vadd.f32 %v592, 1.0
  %v594 = vrcp.pop %v593
  %v595 = vmul.f32 %v593, %v594
  %v596 = vsub.f32 1.0, %v595
  %v597 = vmul.f32 %v594, %v596
  %v598 = vadd.f32 %v594, %v597
  %vm599 = vweird.f32 %v593
  %vm600 = vweird.f32 %v594
  %vm601 = vmor %vm599, %vm600
  %v602 = vsel %vm601, %v594, %v598
  %v603 = vand.u32 2147483647, %v593
  %vm604 = vcmp.eq.f32.partialorder %v603, 8.507059e+37
  %v605 = vand.u32 %v593, 2147483648
  %v606 = vor.u32 1.1754944e-38, %v605
  %v607 = vsel %vm604, %v606, %v602
  %v608 = vmul.f32 1.0, %v607
  %v609 = vtanh.pop %v589
  %v610 = vmul.f32 %v608, %v556
  %612 = vrot.lane.b32.xlu0 %v609, 64
  %v613 = vpop.permute.xlu0 %612
  %v615 = vmul.f32 %v608, %v613
  %617 = vrot.lane.b32.xlu0 %v615, 32
  %v618 = vpop.permute.xlu0 %617
  %v620 = vadd.f32 %v610, %v618
  %v621 = vtanh.pop %v620
  %623 = vrot.lane.b32.xlu0 %v621, 64
  %v624 = vpop.permute.xlu0 %623
  %v626 = vmul.f32 %v608, %v624
  %v627 = vpack.c.bf16 %v626, %v626
  %629 = vrot.lane.b32.xlu0 %v627, 32
  %v630 = vpop.permute.xlu0 %629
  %632 = vst.msk [vmem:[#allocation2 + $0x18] sm:$0xf] %vm247, %v630
  %v633 = vunpack.c.l.b16 %v627
  %v634 = vpack.c.b16 %v633, %v633
  %635 = vrot.lane.b32.xlu0 %v634, 32
  %v636 = vpop.permute.xlu0 %635
  %v638 = vsel %vm187, %v636, 0
  %640 = vmatpush.bf16.msra.mxu0 0
  %641 = vmatpush.bf16.msra.mxu0 0
  %642 = vmatpush.bf16.msra.mxu0 0
  %643 = vmatpush.bf16.msra.mxu0 0
  %644 = vmatpush.bf16.msra.mxu0 0
  %645 = vmatpush.bf16.msra.mxu0 0
  %646 = vmatpush.bf16.msra.mxu0 %v184
  %647 = vmatpush.bf16.msra.mxu0 %v183
  %648 = vmatmul.bf16.gmra.mxu0 %v638
  %v649 = vpop.f32.mrf.mxu0
  %v650 = vadd.f32 0.0, %v649
  %v651 = vpop.f32.mrf.mxu0
  %652 = vdwg.mxu0
  %v653 = vadd.f32 %v173, %v650
  %v654 = vxor.u32 %v653, 2147483648
  %v655 = vmul.f32 %v654, 1.442695
  %v656 = vpow.pop %v655
  %v657 = vadd.f32 %v656, 1.0
  %v658 = vrcp.pop %v657
  %v659 = vmul.f32 %v657, %v658
  %v660 = vsub.f32 1.0, %v659
  %v661 = vmul.f32 %v658, %v660
  %v662 = vadd.f32 %v658, %v661
  %vm663 = vweird.f32 %v657
  %vm664 = vweird.f32 %v658
  %vm665 = vmor %vm663, %vm664
  %v666 = vsel %vm665, %v658, %v662
  %v667 = vand.u32 2147483647, %v657
  %vm668 = vcmp.eq.f32.partialorder %v667, 8.507059e+37
  %v669 = vand.u32 %v657, 2147483648
  %v670 = vor.u32 1.1754944e-38, %v669
  %v671 = vsel %vm668, %v670, %v666
  %v672 = vmul.f32 1.0, %v671
  %v673 = vtanh.pop %v653
  %v674 = vmul.f32 %v672, %v620
  %676 = vrot.lane.b32.xlu0 %v673, 64
  %v677 = vpop.permute.xlu0 %676
  %v679 = vmul.f32 %v672, %v677
  %681 = vrot.lane.b32.xlu0 %v679, 32
  %v682 = vpop.permute.xlu0 %681
  %v684 = vadd.f32 %v674, %v682
  %v685 = vtanh.pop %v684
  %687 = vrot.lane.b32.xlu0 %v685, 64
  %v688 = vpop.permute.xlu0 %687
  %v690 = vmul.f32 %v672, %v688
  %v691 = vpack.c.bf16 %v690, %v690
  %693 = vrot.lane.b32.xlu0 %v691, 32
  %v694 = vpop.permute.xlu0 %693
  %696 = vst.msk [vmem:[#allocation2 + $0x1c] sm:$0xf] %vm247, %v694
  %v697 = vld [vmem:[%s4] sm:$0xf]
  %v698 = vld [vmem:[%s4 + $0x4] sm:$0xf]
  %v699 = vld [vmem:[%s4 + $0x8] sm:$0xf]
  %v700 = vld [vmem:[%s4 + $0xc] sm:$0xf]
  %v701 = vld [vmem:[%s5] sm:$0xf]
  %v702 = vld [vmem:[%s5 + $0x4] sm:$0xf]
  %v703 = vld [vmem:[%s5 + $0x8] sm:$0xf]
  %v704 = vld [vmem:[%s5 + $0xc] sm:$0xf]
  %v705 = vld [vmem:[%s6] sm:$0x1]
  %v706 = vld [vmem:[#allocation2] sm:$0xf]
  %v707 = vld [vmem:[#allocation2 + $0x4] sm:$0xf]
  %v708 = vld [vmem:[#allocation2 + $0x8] sm:$0xf]
  %v709 = vld [vmem:[#allocation2 + $0xc] sm:$0xf]
  %v710 = vld [vmem:[#allocation2 + $0x10] sm:$0xf]
  %v711 = vld [vmem:[#allocation2 + $0x14] sm:$0xf]
  %v712 = vld [vmem:[#allocation2 + $0x18] sm:$0xf]
  %v713 = vld [vmem:[#allocation2 + $0x1c] sm:$0xf]
  %v715 = vperm.slane %v705, 0
  %v725 = vunpack.c.l.b16 %v706
  %v726 = vunpack.c.l.b16 %v707
  %v727 = vunpack.c.l.b16 %v708
  %v728 = vunpack.c.l.b16 %v709
  %v729 = vunpack.c.l.b16 %v710
  %v730 = vunpack.c.l.b16 %v711
  %v731 = vunpack.c.l.b16 %v712
  %v732 = vunpack.c.l.b16 %v713
  %v733 = vpack.c.b16 %v726, %v725
  %v734 = vpack.c.b16 %v728, %v727
  %v735 = vpack.c.b16 %v730, %v729
  %v736 = vpack.c.b16 %v732, %v731
  %v741 = vunpack.c.l.b16 %v697
  %v742 = vunpack.c.l.b16 %v698
  %v743 = vunpack.c.l.b16 %v699
  %v744 = vunpack.c.l.b16 %v700
  %v745 = vpack.c.b16 %v742, %v741
  %v746 = vpack.c.b16 %v744, %v743
  %v750 = vsel %vm187, %v733, 0
  %v753 = vsel %vm187, %v734, 0
  %v756 = vsel %vm187, %v735, 0
  %v759 = vsel %vm187, %v736, 0
  %761 = vmatpush.bf16.msra.mxu0 0
  %762 = vmatpush.bf16.msra.mxu0 0
  %763 = vmatpush.bf16.msra.mxu0 0
  %764 = vmatpush.bf16.msra.mxu0 0
  %765 = vmatpush.bf16.msra.mxu0 0
  %766 = vmatpush.bf16.msra.mxu0 0
  %767 = vmatpush.bf16.msra.mxu0 %v746
  %768 = vmatpush.bf16.msra.mxu0 %v745
  %769 = vmatmul.bf16.gmra.mxu0 %v750
  %v770 = vpop.f32.mrf.mxu0
  %v771 = vadd.f32 %v715, %v770
  %v772 = vpop.f32.mrf.mxu0
  %v773 = vadd.f32 %v715, %v772
  %774 = vmatmul.bf16.gmra.mxu0 %v753
  %v775 = vpop.f32.mrf.mxu0
  %v776 = vadd.f32 %v715, %v775
  %v777 = vpop.f32.mrf.mxu0
  %v778 = vadd.f32 %v715, %v777
  %779 = vmatmul.bf16.gmra.mxu0 %v756
  %v780 = vpop.f32.mrf.mxu0
  %v781 = vadd.f32 %v715, %v780
  %v782 = vpop.f32.mrf.mxu0
  %v783 = vadd.f32 %v715, %v782
  %784 = vmatmul.bf16.gmra.mxu0 %v759
  %v785 = vpop.f32.mrf.mxu0
  %v786 = vadd.f32 %v715, %v785
  %v787 = vpop.f32.mrf.mxu0
  %v788 = vadd.f32 %v715, %v787
  %789 = vdwg.mxu0
  %v794 = vunpack.c.l.b16 %v701
  %v795 = vunpack.c.l.b16 %v702
  %v796 = vunpack.c.l.b16 %v703
  %v797 = vunpack.c.l.b16 %v704
  %v798 = vpack.c.b16 %v795, %v794
  %v799 = vpack.c.b16 %v797, %v796
  %802 = vmatpush.bf16.msra.mxu0 0
  %803 = vmatpush.bf16.msra.mxu0 0
  %804 = vmatpush.bf16.msra.mxu0 0
  %805 = vmatpush.bf16.msra.mxu0 0
  %806 = vmatpush.bf16.msra.mxu0 0
  %807 = vmatpush.bf16.msra.mxu0 0
  %808 = vmatpush.bf16.msra.mxu0 %v799
  %809 = vmatpush.bf16.msra.mxu0 %v798
  %810 = vmatmul.bf16.gmra.mxu0 %v189
  %v811 = vpop.f32.mrf.mxu0
  %v812 = vadd.f32 0.0, %v811
  %v813 = vpop.f32.mrf.mxu0
  %814 = vdwg.mxu0
  %v815 = vadd.f32 %v771, %v812
  %v816 = vxor.u32 %v815, 2147483648
  %v817 = vmul.f32 %v816, 1.442695
  %v818 = vpow.pop %v817
  %v819 = vadd.f32 %v818, 1.0
  %v820 = vrcp.pop %v819
  %v821 = vmul.f32 %v819, %v820
  %v822 = vsub.f32 1.0, %v821
  %v823 = vmul.f32 %v820, %v822
  %v824 = vadd.f32 %v820, %v823
  %vm825 = vweird.f32 %v819
  %vm826 = vweird.f32 %v820
  %vm827 = vmor %vm825, %vm826
  %v828 = vsel %vm827, %v820, %v824
  %v829 = vand.u32 2147483647, %v819
  %vm830 = vcmp.eq.f32.partialorder %v829, 8.507059e+37
  %v831 = vand.u32 %v819, 2147483648
  %v832 = vor.u32 1.1754944e-38, %v831
  %v833 = vsel %vm830, %v832, %v828
  %v834 = vmul.f32 1.0, %v833
  %v835 = vtanh.pop %v815
  %v836 = vmul.f32 %v834, 0.0
  %838 = vrot.lane.b32.xlu0 %v835, 64
  %v839 = vpop.permute.xlu0 %838
  %v841 = vmul.f32 %v834, %v839
  %843 = vrot.lane.b32.xlu0 %v841, 32
  %v844 = vpop.permute.xlu0 %843
  %v846 = vadd.f32 %v836, %v844
  %v847 = vtanh.pop %v846
  %849 = vrot.lane.b32.xlu0 %v847, 64
  %v850 = vpop.permute.xlu0 %849
  %v852 = vmul.f32 %v834, %v850
  %v853 = vpack.c.bf16 %v852, %v852
  %855 = vrot.lane.b32.xlu0 %v853, 32
  %v856 = vpop.permute.xlu0 %855
  %858 = vst.msk [vmem:[#allocation2] sm:$0xf] %vm247, %v856
  %v859 = vunpack.c.l.b16 %v853
  %v860 = vpack.c.b16 %v859, %v859
  %861 = vrot.lane.b32.xlu0 %v860, 32
  %v862 = vpop.permute.xlu0 %861
  %v864 = vsel %vm187, %v862, 0
  %866 = vmatpush.bf16.msra.mxu0 0
  %867 = vmatpush.bf16.msra.mxu0 0
  %868 = vmatpush.bf16.msra.mxu0 0
  %869 = vmatpush.bf16.msra.mxu0 0
  %870 = vmatpush.bf16.msra.mxu0 0
  %871 = vmatpush.bf16.msra.mxu0 0
  %872 = vmatpush.bf16.msra.mxu0 %v799
  %873 = vmatpush.bf16.msra.mxu0 %v798
  %874 = vmatmul.bf16.gmra.mxu0 %v864
  %v875 = vpop.f32.mrf.mxu0
  %v876 = vadd.f32 0.0, %v875
  %v877 = vpop.f32.mrf.mxu0
  %878 = vdwg.mxu0
  %v879 = vadd.f32 %v773, %v876
  %v880 = vxor.u32 %v879, 2147483648
  %v881 = vmul.f32 %v880, 1.442695
  %v882 = vpow.pop %v881
  %v883 = vadd.f32 %v882, 1.0
  %v884 = vrcp.pop %v883
  %v885 = vmul.f32 %v883, %v884
  %v886 = vsub.f32 1.0, %v885
  %v887 = vmul.f32 %v884, %v886
  %v888 = vadd.f32 %v884, %v887
  %vm889 = vweird.f32 %v883
  %vm890 = vweird.f32 %v884
  %vm891 = vmor %vm889, %vm890
  %v892 = vsel %vm891, %v884, %v888
  %v893 = vand.u32 2147483647, %v883
  %vm894 = vcmp.eq.f32.partialorder %v893, 8.507059e+37
  %v895 = vand.u32 %v883, 2147483648
  %v896 = vor.u32 1.1754944e-38, %v895
  %v897 = vsel %vm894, %v896, %v892
  %v898 = vmul.f32 1.0, %v897
  %v899 = vtanh.pop %v879
  %v900 = vmul.f32 %v898, %v846
  %902 = vrot.lane.b32.xlu0 %v899, 64
  %v903 = vpop.permute.xlu0 %902
  %v905 = vmul.f32 %v898, %v903
  %907 = vrot.lane.b32.xlu0 %v905, 32
  %v908 = vpop.permute.xlu0 %907
  %v910 = vadd.f32 %v900, %v908
  %v911 = vtanh.pop %v910
  %913 = vrot.lane.b32.xlu0 %v911, 64
  %v914 = vpop.permute.xlu0 %913
  %v916 = vmul.f32 %v898, %v914
  %v917 = vpack.c.bf16 %v916, %v916
  %919 = vrot.lane.b32.xlu0 %v917, 32
  %v920 = vpop.permute.xlu0 %919
  %922 = vst.msk [vmem:[#allocation2 + $0x4] sm:$0xf] %vm247, %v920
  %v923 = vunpack.c.l.b16 %v917
  %v924 = vpack.c.b16 %v923, %v923
  %925 = vrot.lane.b32.xlu0 %v924, 32
  %v926 = vpop.permute.xlu0 %925
  %v928 = vsel %vm187, %v926, 0
  %930 = vmatpush.bf16.msra.mxu0 0
  %931 = vmatpush.bf16.msra.mxu0 0
  %932 = vmatpush.bf16.msra.mxu0 0
  %933 = vmatpush.bf16.msra.mxu0 0
  %934 = vmatpush.bf16.msra.mxu0 0
  %935 = vmatpush.bf16.msra.mxu0 0
  %936 = vmatpush.bf16.msra.mxu0 %v799
  %937 = vmatpush.bf16.msra.mxu0 %v798
  %938 = vmatmul.bf16.gmra.mxu0 %v928
  %v939 = vpop.f32.mrf.mxu0
  %v940 = vadd.f32 0.0, %v939
  %v941 = vpop.f32.mrf.mxu0
  %942 = vdwg.mxu0
  %v943 = vadd.f32 %v776, %v940
  %v944 = vxor.u32 %v943, 2147483648
  %v945 = vmul.f32 %v944, 1.442695
  %v946 = vpow.pop %v945
  %v947 = vadd.f32 %v946, 1.0
  %v948 = vrcp.pop %v947
  %v949 = vmul.f32 %v947, %v948
  %v950 = vsub.f32 1.0, %v949
  %v951 = vmul.f32 %v948, %v950
  %v952 = vadd.f32 %v948, %v951
  %vm953 = vweird.f32 %v947
  %vm954 = vweird.f32 %v948
  %vm955 = vmor %vm953, %vm954
  %v956 = vsel %vm955, %v948, %v952
  %v957 = vand.u32 2147483647, %v947
  %vm958 = vcmp.eq.f32.partialorder %v957, 8.507059e+37
  %v959 = vand.u32 %v947, 2147483648
  %v960 = vor.u32 1.1754944e-38, %v959
  %v961 = vsel %vm958, %v960, %v956
  %v962 = vmul.f32 1.0, %v961
  %v963 = vtanh.pop %v943
  %v964 = vmul.f32 %v962, %v910
  %966 = vrot.lane.b32.xlu0 %v963, 64
  %v967 = vpop.permute.xlu0 %966
  %v969 = vmul.f32 %v962, %v967
  %971 = vrot.lane.b32.xlu0 %v969, 32
  %v972 = vpop.permute.xlu0 %971
  %v974 = vadd.f32 %v964, %v972
  %v975 = vtanh.pop %v974
  %977 = vrot.lane.b32.xlu0 %v975, 64
  %v978 = vpop.permute.xlu0 %977
  %v980 = vmul.f32 %v962, %v978
  %v981 = vpack.c.bf16 %v980, %v980
  %983 = vrot.lane.b32.xlu0 %v981, 32
  %v984 = vpop.permute.xlu0 %983
  %986 = vst.msk [vmem:[#allocation2 + $0x8] sm:$0xf] %vm247, %v984
  %v987 = vunpack.c.l.b16 %v981
  %v988 = vpack.c.b16 %v987, %v987
  %989 = vrot.lane.b32.xlu0 %v988, 32
  %v990 = vpop.permute.xlu0 %989
  %v992 = vsel %vm187, %v990, 0
  %994 = vmatpush.bf16.msra.mxu0 0
  %995 = vmatpush.bf16.msra.mxu0 0
  %996 = vmatpush.bf16.msra.mxu0 0
  %997 = vmatpush.bf16.msra.mxu0 0
  %998 = vmatpush.bf16.msra.mxu0 0
  %999 = vmatpush.bf16.msra.mxu0 0
  %1000 = vmatpush.bf16.msra.mxu0 %v799
  %1001 = vmatpush.bf16.msra.mxu0 %v798
  %1002 = vmatmul.bf16.gmra.mxu0 %v992
  %v1003 = vpop.f32.mrf.mxu0
  %v1004 = vadd.f32 0.0, %v1003
  %v1005 = vpop.f32.mrf.mxu0
  %1006 = vdwg.mxu0
  %v1007 = vadd.f32 %v778, %v1004
  %v1008 = vxor.u32 %v1007, 2147483648
  %v1009 = vmul.f32 %v1008, 1.442695
  %v1010 = vpow.pop %v1009
  %v1011 = vadd.f32 %v1010, 1.0
  %v1012 = vrcp.pop %v1011
  %v1013 = vmul.f32 %v1011, %v1012
  %v1014 = vsub.f32 1.0, %v1013
  %v1015 = vmul.f32 %v1012, %v1014
  %v1016 = vadd.f32 %v1012, %v1015
  %vm1017 = vweird.f32 %v1011
  %vm1018 = vweird.f32 %v1012
  %vm1019 = vmor %vm1017, %vm1018
  %v1020 = vsel %vm1019, %v1012, %v1016
  %v1021 = vand.u32 2147483647, %v1011
  %vm1022 = vcmp.eq.f32.partialorder %v1021, 8.507059e+37
  %v1023 = vand.u32 %v1011, 2147483648
  %v1024 = vor.u32 1.1754944e-38, %v1023
  %v1025 = vsel %vm1022, %v1024, %v1020
  %v1026 = vmul.f32 1.0, %v1025
  %v1027 = vtanh.pop %v1007
  %v1028 = vmul.f32 %v1026, %v974
  %1030 = vrot.lane.b32.xlu0 %v1027, 64
  %v1031 = vpop.permute.xlu0 %1030
  %v1033 = vmul.f32 %v1026, %v1031
  %1035 = vrot.lane.b32.xlu0 %v1033, 32
  %v1036 = vpop.permute.xlu0 %1035
  %v1038 = vadd.f32 %v1028, %v1036
  %v1039 = vtanh.pop %v1038
  %1041 = vrot.lane.b32.xlu0 %v1039, 64
  %v1042 = vpop.permute.xlu0 %1041
  %v1044 = vmul.f32 %v1026, %v1042
  %v1045 = vpack.c.bf16 %v1044, %v1044
  %1047 = vrot.lane.b32.xlu0 %v1045, 32
  %v1048 = vpop.permute.xlu0 %1047
  %1050 = vst.msk [vmem:[#allocation2 + $0xc] sm:$0xf] %vm247, %v1048
  %v1051 = vunpack.c.l.b16 %v1045
  %v1052 = vpack.c.b16 %v1051, %v1051
  %1053 = vrot.lane.b32.xlu0 %v1052, 32
  %v1054 = vpop.permute.xlu0 %1053
  %v1056 = vsel %vm187, %v1054, 0
  %1058 = vmatpush.bf16.msra.mxu0 0
  %1059 = vmatpush.bf16.msra.mxu0 0
  %1060 = vmatpush.bf16.msra.mxu0 0
  %1061 = vmatpush.bf16.msra.mxu0 0
  %1062 = vmatpush.bf16.msra.mxu0 0
  %1063 = vmatpush.bf16.msra.mxu0 0
  %1064 = vmatpush.bf16.msra.mxu0 %v799
  %1065 = vmatpush.bf16.msra.mxu0 %v798
  %1066 = vmatmul.bf16.gmra.mxu0 %v1056
  %v1067 = vpop.f32.mrf.mxu0
  %v1068 = vadd.f32 0.0, %v1067
  %v1069 = vpop.f32.mrf.mxu0
  %1070 = vdwg.mxu0
  %v1071 = vadd.f32 %v781, %v1068
  %v1072 = vxor.u32 %v1071, 2147483648
  %v1073 = vmul.f32 %v1072, 1.442695
  %v1074 = vpow.pop %v1073
  %v1075 = vadd.f32 %v1074, 1.0
  %v1076 = vrcp.pop %v1075
  %v1077 = vmul.f32 %v1075, %v1076
  %v1078 = vsub.f32 1.0, %v1077
  %v1079 = vmul.f32 %v1076, %v1078
  %v1080 = vadd.f32 %v1076, %v1079
  %vm1081 = vweird.f32 %v1075
  %vm1082 = vweird.f32 %v1076
  %vm1083 = vmor %vm1081, %vm1082
  %v1084 = vsel %vm1083, %v1076, %v1080
  %v1085 = vand.u32 2147483647, %v1075
  %vm1086 = vcmp.eq.f32.partialorder %v1085, 8.507059e+37
  %v1087 = vand.u32 %v1075, 2147483648
  %v1088 = vor.u32 1.1754944e-38, %v1087
  %v1089 = vsel %vm1086, %v1088, %v1084
  %v1090 = vmul.f32 1.0, %v1089
  %v1091 = vtanh.pop %v1071
  %v1092 = vmul.f32 %v1090, %v1038
  %1094 = vrot.lane.b32.xlu0 %v1091, 64
  %v1095 = vpop.permute.xlu0 %1094
  %v1097 = vmul.f32 %v1090, %v1095
  %1099 = vrot.lane.b32.xlu0 %v1097, 32
  %v1100 = vpop.permute.xlu0 %1099
  %v1102 = vadd.f32 %v1092, %v1100
  %v1103 = vtanh.pop %v1102
  %1105 = vrot.lane.b32.xlu0 %v1103, 64
  %v1106 = vpop.permute.xlu0 %1105
  %v1108 = vmul.f32 %v1090, %v1106
  %v1109 = vpack.c.bf16 %v1108, %v1108
  %1111 = vrot.lane.b32.xlu0 %v1109, 32
  %v1112 = vpop.permute.xlu0 %1111
  %1114 = vst.msk [vmem:[#allocation2 + $0x10] sm:$0xf] %vm247, %v1112
  %v1115 = vunpack.c.l.b16 %v1109
  %v1116 = vpack.c.b16 %v1115, %v1115
  %1117 = vrot.lane.b32.xlu0 %v1116, 32
  %v1118 = vpop.permute.xlu0 %1117
  %v1120 = vsel %vm187, %v1118, 0
  %1122 = vmatpush.bf16.msra.mxu0 0
  %1123 = vmatpush.bf16.msra.mxu0 0
  %1124 = vmatpush.bf16.msra.mxu0 0
  %1125 = vmatpush.bf16.msra.mxu0 0
  %1126 = vmatpush.bf16.msra.mxu0 0
  %1127 = vmatpush.bf16.msra.mxu0 0
  %1128 = vmatpush.bf16.msra.mxu0 %v799
  %1129 = vmatpush.bf16.msra.mxu0 %v798
  %1130 = vmatmul.bf16.gmra.mxu0 %v1120
  %v1131 = vpop.f32.mrf.mxu0
  %v1132 = vadd.f32 0.0, %v1131
  %v1133 = vpop.f32.mrf.mxu0
  %1134 = vdwg.mxu0
  %v1135 = vadd.f32 %v783, %v1132
  %v1136 = vxor.u32 %v1135, 2147483648
  %v1137 = vmul.f32 %v1136, 1.442695
  %v1138 = vpow.pop %v1137
  %v1139 = vadd.f32 %v1138, 1.0
  %v1140 = vrcp.pop %v1139
  %v1141 = vmul.f32 %v1139, %v1140
  %v1142 = vsub.f32 1.0, %v1141
  %v1143 = vmul.f32 %v1140, %v1142
  %v1144 = vadd.f32 %v1140, %v1143
  %vm1145 = vweird.f32 %v1139
  %vm1146 = vweird.f32 %v1140
  %vm1147 = vmor %vm1145, %vm1146
  %v1148 = vsel %vm1147, %v1140, %v1144
  %v1149 = vand.u32 2147483647, %v1139
  %vm1150 = vcmp.eq.f32.partialorder %v1149, 8.507059e+37
  %v1151 = vand.u32 %v1139, 2147483648
  %v1152 = vor.u32 1.1754944e-38, %v1151
  %v1153 = vsel %vm1150, %v1152, %v1148
  %v1154 = vmul.f32 1.0, %v1153
  %v1155 = vtanh.pop %v1135
  %v1156 = vmul.f32 %v1154, %v1102
  %1158 = vrot.lane.b32.xlu0 %v1155, 64
  %v1159 = vpop.permute.xlu0 %1158
  %v1161 = vmul.f32 %v1154, %v1159
  %1163 = vrot.lane.b32.xlu0 %v1161, 32
  %v1164 = vpop.permute.xlu0 %1163
  %v1166 = vadd.f32 %v1156, %v1164
  %v1167 = vtanh.pop %v1166
  %1169 = vrot.lane.b32.xlu0 %v1167, 64
  %v1170 = vpop.permute.xlu0 %1169
  %v1172 = vmul.f32 %v1154, %v1170
  %v1173 = vpack.c.bf16 %v1172, %v1172
  %1175 = vrot.lane.b32.xlu0 %v1173, 32
  %v1176 = vpop.permute.xlu0 %1175
  %1178 = vst.msk [vmem:[#allocation2 + $0x14] sm:$0xf] %vm247, %v1176
  %v1179 = vunpack.c.l.b16 %v1173
  %v1180 = vpack.c.b16 %v1179, %v1179
  %1181 = vrot.lane.b32.xlu0 %v1180, 32
  %v1182 = vpop.permute.xlu0 %1181
  %v1184 = vsel %vm187, %v1182, 0
  %1186 = vmatpush.bf16.msra.mxu0 0
  %1187 = vmatpush.bf16.msra.mxu0 0
  %1188 = vmatpush.bf16.msra.mxu0 0
  %1189 = vmatpush.bf16.msra.mxu0 0
  %1190 = vmatpush.bf16.msra.mxu0 0
  %1191 = vmatpush.bf16.msra.mxu0 0
  %1192 = vmatpush.bf16.msra.mxu0 %v799
  %1193 = vmatpush.bf16.msra.mxu0 %v798
  %1194 = vmatmul.bf16.gmra.mxu0 %v1184
  %v1195 = vpop.f32.mrf.mxu0
  %v1196 = vadd.f32 0.0, %v1195
  %v1197 = vpop.f32.mrf.mxu0
  %1198 = vdwg.mxu0
  %v1199 = vadd.f32 %v786, %v1196
  %v1200 = vxor.u32 %v1199, 2147483648
  %v1201 = vmul.f32 %v1200, 1.442695
  %v1202 = vpow.pop %v1201
  %v1203 = vadd.f32 %v1202, 1.0
  %v1204 = vrcp.pop %v1203
  %v1205 = vmul.f32 %v1203, %v1204
  %v1206 = vsub.f32 1.0, %v1205
  %v1207 = vmul.f32 %v1204, %v1206
  %v1208 = vadd.f32 %v1204, %v1207
  %vm1209 = vweird.f32 %v1203
  %vm1210 = vweird.f32 %v1204
  %vm1211 = vmor %vm1209, %vm1210
  %v1212 = vsel %vm1211, %v1204, %v1208
  %v1213 = vand.u32 2147483647, %v1203
  %vm1214 = vcmp.eq.f32.partialorder %v1213, 8.507059e+37
  %v1215 = vand.u32 %v1203, 2147483648
  %v1216 = vor.u32 1.1754944e-38, %v1215
  %v1217 = vsel %vm1214, %v1216, %v1212
  %v1218 = vmul.f32 1.0, %v1217
  %v1219 = vtanh.pop %v1199
  %v1220 = vmul.f32 %v1218, %v1166
  %1222 = vrot.lane.b32.xlu0 %v1219, 64
  %v1223 = vpop.permute.xlu0 %1222
  %v1225 = vmul.f32 %v1218, %v1223
  %1227 = vrot.lane.b32.xlu0 %v1225, 32
  %v1228 = vpop.permute.xlu0 %1227
  %v1230 = vadd.f32 %v1220, %v1228
  %v1231 = vtanh.pop %v1230
  %1233 = vrot.lane.b32.xlu0 %v1231, 64
  %v1234 = vpop.permute.xlu0 %1233
  %v1236 = vmul.f32 %v1218, %v1234
  %v1237 = vpack.c.bf16 %v1236, %v1236
  %1239 = vrot.lane.b32.xlu0 %v1237, 32
  %v1240 = vpop.permute.xlu0 %1239
  %1242 = vst.msk [vmem:[#allocation2 + $0x18] sm:$0xf] %vm247, %v1240
  %v1243 = vunpack.c.l.b16 %v1237
  %v1244 = vpack.c.b16 %v1243, %v1243
  %1245 = vrot.lane.b32.xlu0 %v1244, 32
  %v1246 = vpop.permute.xlu0 %1245
  %v1248 = vsel %vm187, %v1246, 0
  %1250 = vmatpush.bf16.msra.mxu0 0
  %1251 = vmatpush.bf16.msra.mxu0 0
  %1252 = vmatpush.bf16.msra.mxu0 0
  %1253 = vmatpush.bf16.msra.mxu0 0
  %1254 = vmatpush.bf16.msra.mxu0 0
  %1255 = vmatpush.bf16.msra.mxu0 0
  %1256 = vmatpush.bf16.msra.mxu0 %v799
  %1257 = vmatpush.bf16.msra.mxu0 %v798
  %1258 = vmatmul.bf16.gmra.mxu0 %v1248
  %v1259 = vpop.f32.mrf.mxu0
  %v1260 = vadd.f32 0.0, %v1259
  %v1261 = vpop.f32.mrf.mxu0
  %1262 = vdwg.mxu0
  %v1263 = vadd.f32 %v788, %v1260
  %v1264 = vxor.u32 %v1263, 2147483648
  %v1265 = vmul.f32 %v1264, 1.442695
  %v1266 = vpow.pop %v1265
  %v1267 = vadd.f32 %v1266, 1.0
  %v1268 = vrcp.pop %v1267
  %v1269 = vmul.f32 %v1267, %v1268
  %v1270 = vsub.f32 1.0, %v1269
  %v1271 = vmul.f32 %v1268, %v1270
  %v1272 = vadd.f32 %v1268, %v1271
  %vm1273 = vweird.f32 %v1267
  %vm1274 = vweird.f32 %v1268
  %vm1275 = vmor %vm1273, %vm1274
  %v1276 = vsel %vm1275, %v1268, %v1272
  %v1277 = vand.u32 2147483647, %v1267
  %vm1278 = vcmp.eq.f32.partialorder %v1277, 8.507059e+37
  %v1279 = vand.u32 %v1267, 2147483648
  %v1280 = vor.u32 1.1754944e-38, %v1279
  %v1281 = vsel %vm1278, %v1280, %v1276
  %v1282 = vmul.f32 1.0, %v1281
  %v1283 = vtanh.pop %v1263
  %v1284 = vmul.f32 %v1282, %v1230
  %1286 = vrot.lane.b32.xlu0 %v1283, 64
  %v1287 = vpop.permute.xlu0 %1286
  %v1289 = vmul.f32 %v1282, %v1287
  %1291 = vrot.lane.b32.xlu0 %v1289, 32
  %v1292 = vpop.permute.xlu0 %1291
  %v1294 = vadd.f32 %v1284, %v1292
  %v1295 = vtanh.pop %v1294
  %1297 = vrot.lane.b32.xlu0 %v1295, 64
  %v1298 = vpop.permute.xlu0 %1297
  %v1300 = vmul.f32 %v1282, %v1298
  %v1301 = vpack.c.bf16 %v1300, %v1300
  %1303 = vrot.lane.b32.xlu0 %v1301, 32
  %v1304 = vpop.permute.xlu0 %1303
  %1306 = vst.msk [vmem:[#allocation2 + $0x1c] sm:$0xf] %vm247, %v1304
  %v1307 = vld [vmem:[%s7] sm:$0xf]
  %v1308 = vld [vmem:[%s7 + $0x4] sm:$0xf]
  %v1309 = vld [vmem:[%s7 + $0x8] sm:$0xf]
  %v1310 = vld [vmem:[%s7 + $0xc] sm:$0xf]
  %v1311 = vld [vmem:[%s8] sm:$0xf]
  %v1312 = vld [vmem:[%s8 + $0x4] sm:$0xf]
  %v1313 = vld [vmem:[%s8 + $0x8] sm:$0xf]
  %v1314 = vld [vmem:[%s8 + $0xc] sm:$0xf]
  %v1315 = vld [vmem:[%s9] sm:$0x1]
  %v1316 = vld [vmem:[#allocation2] sm:$0xf]
  %v1317 = vld [vmem:[#allocation2 + $0x4] sm:$0xf]
  %v1318 = vld [vmem:[#allocation2 + $0x8] sm:$0xf]
  %v1319 = vld [vmem:[#allocation2 + $0xc] sm:$0xf]
  %v1320 = vld [vmem:[#allocation2 + $0x10] sm:$0xf]
  %v1321 = vld [vmem:[#allocation2 + $0x14] sm:$0xf]
  %v1322 = vld [vmem:[#allocation2 + $0x18] sm:$0xf]
  %v1323 = vld [vmem:[#allocation2 + $0x1c] sm:$0xf]
  %v1325 = vperm.slane %v1315, 0
  %v1335 = vunpack.c.l.b16 %v1316
  %v1336 = vunpack.c.l.b16 %v1317
  %v1337 = vunpack.c.l.b16 %v1318
  %v1338 = vunpack.c.l.b16 %v1319
  %v1339 = vunpack.c.l.b16 %v1320
  %v1340 = vunpack.c.l.b16 %v1321
  %v1341 = vunpack.c.l.b16 %v1322
  %v1342 = vunpack.c.l.b16 %v1323
  %v1343 = vpack.c.b16 %v1336, %v1335
  %v1344 = vpack.c.b16 %v1338, %v1337
  %v1345 = vpack.c.b16 %v1340, %v1339
  %v1346 = vpack.c.b16 %v1342, %v1341
  %v1351 = vunpack.c.l.b16 %v1307
  %v1352 = vunpack.c.l.b16 %v1308
  %v1353 = vunpack.c.l.b16 %v1309
  %v1354 = vunpack.c.l.b16 %v1310
  %v1355 = vpack.c.b16 %v1352, %v1351
  %v1356 = vpack.c.b16 %v1354, %v1353
  %v1360 = vsel %vm187, %v1343, 0
  %v1363 = vsel %vm187, %v1344, 0
  %v1366 = vsel %vm187, %v1345, 0
  %v1369 = vsel %vm187, %v1346, 0
  %1371 = vmatpush.bf16.msra.mxu0 0
  %1372 = vmatpush.bf16.msra.mxu0 0
  %1373 = vmatpush.bf16.msra.mxu0 0
  %1374 = vmatpush.bf16.msra.mxu0 0
  %1375 = vmatpush.bf16.msra.mxu0 0
  %1376 = vmatpush.bf16.msra.mxu0 0
  %1377 = vmatpush.bf16.msra.mxu0 %v1356
  %1378 = vmatpush.bf16.msra.mxu0 %v1355
  %1379 = vmatmul.bf16.gmra.mxu0 %v1360
  %v1380 = vpop.f32.mrf.mxu0
  %v1381 = vadd.f32 %v1325, %v1380
  %v1382 = vpop.f32.mrf.mxu0
  %v1383 = vadd.f32 %v1325, %v1382
  %1384 = vmatmul.bf16.gmra.mxu0 %v1363
  %v1385 = vpop.f32.mrf.mxu0
  %v1386 = vadd.f32 %v1325, %v1385
  %v1387 = vpop.f32.mrf.mxu0
  %v1388 = vadd.f32 %v1325, %v1387
  %1389 = vmatmul.bf16.gmra.mxu0 %v1366
  %v1390 = vpop.f32.mrf.mxu0
  %v1391 = vadd.f32 %v1325, %v1390
  %v1392 = vpop.f32.mrf.mxu0
  %v1393 = vadd.f32 %v1325, %v1392
  %1394 = vmatmul.bf16.gmra.mxu0 %v1369
  %v1395 = vpop.f32.mrf.mxu0
  %v1396 = vadd.f32 %v1325, %v1395
  %v1397 = vpop.f32.mrf.mxu0
  %v1398 = vadd.f32 %v1325, %v1397
  %1399 = vdwg.mxu0
  %v1404 = vunpack.c.l.b16 %v1311
  %v1405 = vunpack.c.l.b16 %v1312
  %v1406 = vunpack.c.l.b16 %v1313
  %v1407 = vunpack.c.l.b16 %v1314
  %v1408 = vpack.c.b16 %v1405, %v1404
  %v1409 = vpack.c.b16 %v1407, %v1406
  %1412 = vmatpush.bf16.msra.mxu0 0
  %1413 = vmatpush.bf16.msra.mxu0 0
  %1414 = vmatpush.bf16.msra.mxu0 0
  %1415 = vmatpush.bf16.msra.mxu0 0
  %1416 = vmatpush.bf16.msra.mxu0 0
  %1417 = vmatpush.bf16.msra.mxu0 0
  %1418 = vmatpush.bf16.msra.mxu0 %v1409
  %1419 = vmatpush.bf16.msra.mxu0 %v1408
  %1420 = vmatmul.bf16.gmra.mxu0 %v189
  %v1421 = vpop.f32.mrf.mxu0
  %v1422 = vadd.f32 0.0, %v1421
  %v1423 = vpop.f32.mrf.mxu0
  %1424 = vdwg.mxu0
  %v1425 = vadd.f32 %v1381, %v1422
  %v1426 = vxor.u32 %v1425, 2147483648
  %v1427 = vmul.f32 %v1426, 1.442695
  %v1428 = vpow.pop %v1427
  %v1429 = vadd.f32 %v1428, 1.0
  %v1430 = vrcp.pop %v1429
  %v1431 = vmul.f32 %v1429, %v1430
  %v1432 = vsub.f32 1.0, %v1431
  %v1433 = vmul.f32 %v1430, %v1432
  %v1434 = vadd.f32 %v1430, %v1433
  %vm1435 = vweird.f32 %v1429
  %vm1436 = vweird.f32 %v1430
  %vm1437 = vmor %vm1435, %vm1436
  %v1438 = vsel %vm1437, %v1430, %v1434
  %v1439 = vand.u32 2147483647, %v1429
  %vm1440 = vcmp.eq.f32.partialorder %v1439, 8.507059e+37
  %v1441 = vand.u32 %v1429, 2147483648
  %v1442 = vor.u32 1.1754944e-38, %v1441
  %v1443 = vsel %vm1440, %v1442, %v1438
  %v1444 = vmul.f32 1.0, %v1443
  %v1445 = vtanh.pop %v1425
  %v1446 = vmul.f32 %v1444, 0.0
  %1448 = vrot.lane.b32.xlu0 %v1445, 64
  %v1449 = vpop.permute.xlu0 %1448
  %v1451 = vmul.f32 %v1444, %v1449
  %1453 = vrot.lane.b32.xlu0 %v1451, 32
  %v1454 = vpop.permute.xlu0 %1453
  %v1456 = vadd.f32 %v1446, %v1454
  %v1457 = vtanh.pop %v1456
  %1459 = vrot.lane.b32.xlu0 %v1457, 64
  %v1460 = vpop.permute.xlu0 %1459
  %v1462 = vmul.f32 %v1444, %v1460
  %v1463 = vpack.c.bf16 %v1462, %v1462
  %1465 = vrot.lane.b32.xlu0 %v1463, 32
  %v1466 = vpop.permute.xlu0 %1465
  %v1468 = vsel %vm187, %v1466, 0
  %1470 = vmatpush.bf16.msra.mxu0 0
  %1471 = vmatpush.bf16.msra.mxu0 0
  %1472 = vmatpush.bf16.msra.mxu0 0
  %1473 = vmatpush.bf16.msra.mxu0 0
  %1474 = vmatpush.bf16.msra.mxu0 0
  %1475 = vmatpush.bf16.msra.mxu0 0
  %1476 = vmatpush.bf16.msra.mxu0 %v1409
  %1477 = vmatpush.bf16.msra.mxu0 %v1408
  %1478 = vmatmul.bf16.gmra.mxu0 %v1468
  %v1479 = vpop.f32.mrf.mxu0
  %v1480 = vadd.f32 0.0, %v1479
  %v1481 = vpop.f32.mrf.mxu0
  %1482 = vdwg.mxu0
  %v1483 = vadd.f32 %v1383, %v1480
  %v1484 = vxor.u32 %v1483, 2147483648
  %v1485 = vmul.f32 %v1484, 1.442695
  %v1486 = vpow.pop %v1485
  %v1487 = vadd.f32 %v1486, 1.0
  %v1488 = vrcp.pop %v1487
  %v1489 = vmul.f32 %v1487, %v1488
  %v1490 = vsub.f32 1.0, %v1489
  %v1491 = vmul.f32 %v1488, %v1490
  %v1492 = vadd.f32 %v1488, %v1491
  %vm1493 = vweird.f32 %v1487
  %vm1494 = vweird.f32 %v1488
  %vm1495 = vmor %vm1493, %vm1494
  %v1496 = vsel %vm1495, %v1488, %v1492
  %v1497 = vand.u32 2147483647, %v1487
  %vm1498 = vcmp.eq.f32.partialorder %v1497, 8.507059e+37
  %v1499 = vand.u32 %v1487, 2147483648
  %v1500 = vor.u32 1.1754944e-38, %v1499
  %v1501 = vsel %vm1498, %v1500, %v1496
  %v1502 = vmul.f32 1.0, %v1501
  %v1503 = vtanh.pop %v1483
  %v1504 = vmul.f32 %v1502, %v1456
  %1506 = vrot.lane.b32.xlu0 %v1503, 64
  %v1507 = vpop.permute.xlu0 %1506
  %v1509 = vmul.f32 %v1502, %v1507
  %1511 = vrot.lane.b32.xlu0 %v1509, 32
  %v1512 = vpop.permute.xlu0 %1511
  %v1514 = vadd.f32 %v1504, %v1512
  %v1515 = vtanh.pop %v1514
  %1517 = vrot.lane.b32.xlu0 %v1515, 64
  %v1518 = vpop.permute.xlu0 %1517
  %v1520 = vmul.f32 %v1502, %v1518
  %v1521 = vpack.c.bf16 %v1520, %v1520
  %1523 = vrot.lane.b32.xlu0 %v1521, 32
  %v1524 = vpop.permute.xlu0 %1523
  %v1526 = vsel %vm187, %v1524, 0
  %1528 = vmatpush.bf16.msra.mxu0 0
  %1529 = vmatpush.bf16.msra.mxu0 0
  %1530 = vmatpush.bf16.msra.mxu0 0
  %1531 = vmatpush.bf16.msra.mxu0 0
  %1532 = vmatpush.bf16.msra.mxu0 0
  %1533 = vmatpush.bf16.msra.mxu0 0
  %1534 = vmatpush.bf16.msra.mxu0 %v1409
  %1535 = vmatpush.bf16.msra.mxu0 %v1408
  %1536 = vmatmul.bf16.gmra.mxu0 %v1526
  %v1537 = vpop.f32.mrf.mxu0
  %v1538 = vadd.f32 0.0, %v1537
  %v1539 = vpop.f32.mrf.mxu0
  %1540 = vdwg.mxu0
  %v1541 = vadd.f32 %v1386, %v1538
  %v1542 = vxor.u32 %v1541, 2147483648
  %v1543 = vmul.f32 %v1542, 1.442695
  %v1544 = vpow.pop %v1543
  %v1545 = vadd.f32 %v1544, 1.0
  %v1546 = vrcp.pop %v1545
  %v1547 = vmul.f32 %v1545, %v1546
  %v1548 = vsub.f32 1.0, %v1547
  %v1549 = vmul.f32 %v1546, %v1548
  %v1550 = vadd.f32 %v1546, %v1549
  %vm1551 = vweird.f32 %v1545
  %vm1552 = vweird.f32 %v1546
  %vm1553 = vmor %vm1551, %vm1552
  %v1554 = vsel %vm1553, %v1546, %v1550
  %v1555 = vand.u32 2147483647, %v1545
  %vm1556 = vcmp.eq.f32.partialorder %v1555, 8.507059e+37
  %v1557 = vand.u32 %v1545, 2147483648
  %v1558 = vor.u32 1.1754944e-38, %v1557
  %v1559 = vsel %vm1556, %v1558, %v1554
  %v1560 = vmul.f32 1.0, %v1559
  %v1561 = vtanh.pop %v1541
  %v1562 = vmul.f32 %v1560, %v1514
  %1564 = vrot.lane.b32.xlu0 %v1561, 64
  %v1565 = vpop.permute.xlu0 %1564
  %v1567 = vmul.f32 %v1560, %v1565
  %1569 = vrot.lane.b32.xlu0 %v1567, 32
  %v1570 = vpop.permute.xlu0 %1569
  %v1572 = vadd.f32 %v1562, %v1570
  %v1573 = vtanh.pop %v1572
  %1575 = vrot.lane.b32.xlu0 %v1573, 64
  %v1576 = vpop.permute.xlu0 %1575
  %v1578 = vmul.f32 %v1560, %v1576
  %v1579 = vpack.c.bf16 %v1578, %v1578
  %1581 = vrot.lane.b32.xlu0 %v1579, 32
  %v1582 = vpop.permute.xlu0 %1581
  %v1584 = vsel %vm187, %v1582, 0
  %1586 = vmatpush.bf16.msra.mxu0 0
  %1587 = vmatpush.bf16.msra.mxu0 0
  %1588 = vmatpush.bf16.msra.mxu0 0
  %1589 = vmatpush.bf16.msra.mxu0 0
  %1590 = vmatpush.bf16.msra.mxu0 0
  %1591 = vmatpush.bf16.msra.mxu0 0
  %1592 = vmatpush.bf16.msra.mxu0 %v1409
  %1593 = vmatpush.bf16.msra.mxu0 %v1408
  %1594 = vmatmul.bf16.gmra.mxu0 %v1584
  %v1595 = vpop.f32.mrf.mxu0
  %v1596 = vadd.f32 0.0, %v1595
  %v1597 = vpop.f32.mrf.mxu0
  %1598 = vdwg.mxu0
  %v1599 = vadd.f32 %v1388, %v1596
  %v1600 = vxor.u32 %v1599, 2147483648
  %v1601 = vmul.f32 %v1600, 1.442695
  %v1602 = vpow.pop %v1601
  %v1603 = vadd.f32 %v1602, 1.0
  %v1604 = vrcp.pop %v1603
  %v1605 = vmul.f32 %v1603, %v1604
  %v1606 = vsub.f32 1.0, %v1605
  %v1607 = vmul.f32 %v1604, %v1606
  %v1608 = vadd.f32 %v1604, %v1607
  %vm1609 = vweird.f32 %v1603
  %vm1610 = vweird.f32 %v1604
  %vm1611 = vmor %vm1609, %vm1610
  %v1612 = vsel %vm1611, %v1604, %v1608
  %v1613 = vand.u32 2147483647, %v1603
  %vm1614 = vcmp.eq.f32.partialorder %v1613, 8.507059e+37
  %v1615 = vand.u32 %v1603, 2147483648
  %v1616 = vor.u32 1.1754944e-38, %v1615
  %v1617 = vsel %vm1614, %v1616, %v1612
  %v1618 = vmul.f32 1.0, %v1617
  %v1619 = vtanh.pop %v1599
  %v1620 = vmul.f32 %v1618, %v1572
  %1622 = vrot.lane.b32.xlu0 %v1619, 64
  %v1623 = vpop.permute.xlu0 %1622
  %v1625 = vmul.f32 %v1618, %v1623
  %1627 = vrot.lane.b32.xlu0 %v1625, 32
  %v1628 = vpop.permute.xlu0 %1627
  %v1630 = vadd.f32 %v1620, %v1628
  %v1631 = vtanh.pop %v1630
  %1633 = vrot.lane.b32.xlu0 %v1631, 64
  %v1634 = vpop.permute.xlu0 %1633
  %v1636 = vmul.f32 %v1618, %v1634
  %v1637 = vpack.c.bf16 %v1636, %v1636
  %1639 = vrot.lane.b32.xlu0 %v1637, 32
  %v1640 = vpop.permute.xlu0 %1639
  %v1642 = vsel %vm187, %v1640, 0
  %1644 = vmatpush.bf16.msra.mxu0 0
  %1645 = vmatpush.bf16.msra.mxu0 0
  %1646 = vmatpush.bf16.msra.mxu0 0
  %1647 = vmatpush.bf16.msra.mxu0 0
  %1648 = vmatpush.bf16.msra.mxu0 0
  %1649 = vmatpush.bf16.msra.mxu0 0
  %1650 = vmatpush.bf16.msra.mxu0 %v1409
  %1651 = vmatpush.bf16.msra.mxu0 %v1408
  %1652 = vmatmul.bf16.gmra.mxu0 %v1642
  %v1653 = vpop.f32.mrf.mxu0
  %v1654 = vadd.f32 0.0, %v1653
  %v1655 = vpop.f32.mrf.mxu0
  %1656 = vdwg.mxu0
  %v1657 = vadd.f32 %v1391, %v1654
  %v1658 = vxor.u32 %v1657, 2147483648
  %v1659 = vmul.f32 %v1658, 1.442695
  %v1660 = vpow.pop %v1659
  %v1661 = vadd.f32 %v1660, 1.0
  %v1662 = vrcp.pop %v1661
  %v1663 = vmul.f32 %v1661, %v1662
  %v1664 = vsub.f32 1.0, %v1663
  %v1665 = vmul.f32 %v1662, %v1664
  %v1666 = vadd.f32 %v1662, %v1665
  %vm1667 = vweird.f32 %v1661
  %vm1668 = vweird.f32 %v1662
  %vm1669 = vmor %vm1667, %vm1668
  %v1670 = vsel %vm1669, %v1662, %v1666
  %v1671 = vand.u32 2147483647, %v1661
  %vm1672 = vcmp.eq.f32.partialorder %v1671, 8.507059e+37
  %v1673 = vand.u32 %v1661, 2147483648
  %v1674 = vor.u32 1.1754944e-38, %v1673
  %v1675 = vsel %vm1672, %v1674, %v1670
  %v1676 = vmul.f32 1.0, %v1675
  %v1677 = vtanh.pop %v1657
  %v1678 = vmul.f32 %v1676, %v1630
  %1680 = vrot.lane.b32.xlu0 %v1677, 64
  %v1681 = vpop.permute.xlu0 %1680
  %v1683 = vmul.f32 %v1676, %v1681
  %1685 = vrot.lane.b32.xlu0 %v1683, 32
  %v1686 = vpop.permute.xlu0 %1685
  %v1688 = vadd.f32 %v1678, %v1686
  %v1689 = vtanh.pop %v1688
  %1691 = vrot.lane.b32.xlu0 %v1689, 64
  %v1692 = vpop.permute.xlu0 %1691
  %v1694 = vmul.f32 %v1676, %v1692
  %v1695 = vpack.c.bf16 %v1694, %v1694
  %1697 = vrot.lane.b32.xlu0 %v1695, 32
  %v1698 = vpop.permute.xlu0 %1697
  %v1700 = vsel %vm187, %v1698, 0
  %1702 = vmatpush.bf16.msra.mxu0 0
  %1703 = vmatpush.bf16.msra.mxu0 0
  %1704 = vmatpush.bf16.msra.mxu0 0
  %1705 = vmatpush.bf16.msra.mxu0 0
  %1706 = vmatpush.bf16.msra.mxu0 0
  %1707 = vmatpush.bf16.msra.mxu0 0
  %1708 = vmatpush.bf16.msra.mxu0 %v1409
  %1709 = vmatpush.bf16.msra.mxu0 %v1408
  %1710 = vmatmul.bf16.gmra.mxu0 %v1700
  %v1711 = vpop.f32.mrf.mxu0
  %v1712 = vadd.f32 0.0, %v1711
  %v1713 = vpop.f32.mrf.mxu0
  %1714 = vdwg.mxu0
  %v1715 = vadd.f32 %v1393, %v1712
  %v1716 = vxor.u32 %v1715, 2147483648
  %v1717 = vmul.f32 %v1716, 1.442695
  %v1718 = vpow.pop %v1717
  %v1719 = vadd.f32 %v1718, 1.0
  %v1720 = vrcp.pop %v1719
  %v1721 = vmul.f32 %v1719, %v1720
  %v1722 = vsub.f32 1.0, %v1721
  %v1723 = vmul.f32 %v1720, %v1722
  %v1724 = vadd.f32 %v1720, %v1723
  %vm1725 = vweird.f32 %v1719
  %vm1726 = vweird.f32 %v1720
  %vm1727 = vmor %vm1725, %vm1726
  %v1728 = vsel %vm1727, %v1720, %v1724
  %v1729 = vand.u32 2147483647, %v1719
  %vm1730 = vcmp.eq.f32.partialorder %v1729, 8.507059e+37
  %v1731 = vand.u32 %v1719, 2147483648
  %v1732 = vor.u32 1.1754944e-38, %v1731
  %v1733 = vsel %vm1730, %v1732, %v1728
  %v1734 = vmul.f32 1.0, %v1733
  %v1735 = vtanh.pop %v1715
  %v1736 = vmul.f32 %v1734, %v1688
  %1738 = vrot.lane.b32.xlu0 %v1735, 64
  %v1739 = vpop.permute.xlu0 %1738
  %v1741 = vmul.f32 %v1734, %v1739
  %1743 = vrot.lane.b32.xlu0 %v1741, 32
  %v1744 = vpop.permute.xlu0 %1743
  %v1746 = vadd.f32 %v1736, %v1744
  %v1747 = vtanh.pop %v1746
  %1749 = vrot.lane.b32.xlu0 %v1747, 64
  %v1750 = vpop.permute.xlu0 %1749
  %v1752 = vmul.f32 %v1734, %v1750
  %v1753 = vpack.c.bf16 %v1752, %v1752
  %1755 = vrot.lane.b32.xlu0 %v1753, 32
  %v1756 = vpop.permute.xlu0 %1755
  %v1758 = vsel %vm187, %v1756, 0
  %1760 = vmatpush.bf16.msra.mxu0 0
  %1761 = vmatpush.bf16.msra.mxu0 0
  %1762 = vmatpush.bf16.msra.mxu0 0
  %1763 = vmatpush.bf16.msra.mxu0 0
  %1764 = vmatpush.bf16.msra.mxu0 0
  %1765 = vmatpush.bf16.msra.mxu0 0
  %1766 = vmatpush.bf16.msra.mxu0 %v1409
  %1767 = vmatpush.bf16.msra.mxu0 %v1408
  %1768 = vmatmul.bf16.gmra.mxu0 %v1758
  %v1769 = vpop.f32.mrf.mxu0
  %v1770 = vadd.f32 0.0, %v1769
  %v1771 = vpop.f32.mrf.mxu0
  %1772 = vdwg.mxu0
  %v1773 = vadd.f32 %v1396, %v1770
  %v1774 = vxor.u32 %v1773, 2147483648
  %v1775 = vmul.f32 %v1774, 1.442695
  %v1776 = vpow.pop %v1775
  %v1777 = vadd.f32 %v1776, 1.0
  %v1778 = vrcp.pop %v1777
  %v1779 = vmul.f32 %v1777, %v1778
  %v1780 = vsub.f32 1.0, %v1779
  %v1781 = vmul.f32 %v1778, %v1780
  %v1782 = vadd.f32 %v1778, %v1781
  %vm1783 = vweird.f32 %v1777
  %vm1784 = vweird.f32 %v1778
  %vm1785 = vmor %vm1783, %vm1784
  %v1786 = vsel %vm1785, %v1778, %v1782
  %v1787 = vand.u32 2147483647, %v1777
  %vm1788 = vcmp.eq.f32.partialorder %v1787, 8.507059e+37
  %v1789 = vand.u32 %v1777, 2147483648
  %v1790 = vor.u32 1.1754944e-38, %v1789
  %v1791 = vsel %vm1788, %v1790, %v1786
  %v1792 = vmul.f32 1.0, %v1791
  %v1793 = vtanh.pop %v1773
  %v1794 = vmul.f32 %v1792, %v1746
  %1796 = vrot.lane.b32.xlu0 %v1793, 64
  %v1797 = vpop.permute.xlu0 %1796
  %v1799 = vmul.f32 %v1792, %v1797
  %1801 = vrot.lane.b32.xlu0 %v1799, 32
  %v1802 = vpop.permute.xlu0 %1801
  %v1804 = vadd.f32 %v1794, %v1802
  %v1805 = vtanh.pop %v1804
  %1807 = vrot.lane.b32.xlu0 %v1805, 64
  %v1808 = vpop.permute.xlu0 %1807
  %v1810 = vmul.f32 %v1792, %v1808
  %v1811 = vpack.c.bf16 %v1810, %v1810
  %1813 = vrot.lane.b32.xlu0 %v1811, 32
  %v1814 = vpop.permute.xlu0 %1813
  %v1816 = vsel %vm187, %v1814, 0
  %1818 = vmatpush.bf16.msra.mxu0 0
  %1819 = vmatpush.bf16.msra.mxu0 0
  %1820 = vmatpush.bf16.msra.mxu0 0
  %1821 = vmatpush.bf16.msra.mxu0 0
  %1822 = vmatpush.bf16.msra.mxu0 0
  %1823 = vmatpush.bf16.msra.mxu0 0
  %1824 = vmatpush.bf16.msra.mxu0 %v1409
  %1825 = vmatpush.bf16.msra.mxu0 %v1408
  %1826 = vmatmul.bf16.gmra.mxu0 %v1816
  %v1827 = vpop.f32.mrf.mxu0
  %v1828 = vadd.f32 0.0, %v1827
  %v1829 = vpop.f32.mrf.mxu0
  %1830 = vdwg.mxu0
  %v1831 = vadd.f32 %v1398, %v1828
  %v1832 = vxor.u32 %v1831, 2147483648
  %v1833 = vmul.f32 %v1832, 1.442695
  %v1834 = vpow.pop %v1833
  %v1835 = vadd.f32 %v1834, 1.0
  %v1836 = vrcp.pop %v1835
  %v1837 = vmul.f32 %v1835, %v1836
  %v1838 = vsub.f32 1.0, %v1837
  %v1839 = vmul.f32 %v1836, %v1838
  %v1840 = vadd.f32 %v1836, %v1839
  %vm1841 = vweird.f32 %v1835
  %vm1842 = vweird.f32 %v1836
  %vm1843 = vmor %vm1841, %vm1842
  %v1844 = vsel %vm1843, %v1836, %v1840
  %v1845 = vand.u32 2147483647, %v1835
  %vm1846 = vcmp.eq.f32.partialorder %v1845, 8.507059e+37
  %v1847 = vand.u32 %v1835, 2147483648
  %v1848 = vor.u32 1.1754944e-38, %v1847
  %v1849 = vsel %vm1846, %v1848, %v1844
  %v1850 = vmul.f32 1.0, %v1849
  %v1851 = vtanh.pop %v1831
  %v1852 = vmul.f32 %v1850, %v1804
  %1854 = vrot.lane.b32.xlu0 %v1851, 64
  %v1855 = vpop.permute.xlu0 %1854
  %v1857 = vmul.f32 %v1850, %v1855
  %1859 = vrot.lane.b32.xlu0 %v1857, 32
  %v1860 = vpop.permute.xlu0 %1859
  %v1862 = vadd.f32 %v1852, %v1860
  %v1863 = vtanh.pop %v1862
  %1865 = vrot.lane.b32.xlu0 %v1863, 64
  %v1866 = vpop.permute.xlu0 %1865
  %v1868 = vmul.f32 %v1850, %v1866
  %v1869 = vpack.c.bf16 %v1868, %v1868
  %v1870 = vld [vmem:[%s10] sm:$0xf]
  %v1871 = vld [vmem:[%s10 + $0x4] sm:$0xf]
  %v1872 = vld [vmem:[%s10 + $0x8] sm:$0xf]
  %v1873 = vld [vmem:[%s10 + $0xc] sm:$0xf]
  %v1874 = vld [vmem:[%s11] sm:$0x1]
  %v1876 = vperm.slane %v1874, 0
  %1879 = vrot.lane.b32.xlu0 %v1869, 32
  %v1880 = vpop.permute.xlu0 %1879
  %v1885 = vunpack.c.l.b16 %v1870
  %v1886 = vunpack.c.l.b16 %v1871
  %v1887 = vunpack.c.l.b16 %v1872
  %v1888 = vunpack.c.l.b16 %v1873
  %v1889 = vpack.c.b16 %v1886, %v1885
  %v1890 = vpack.c.b16 %v1888, %v1887
  %v1894 = vsel %vm187, %v1880, 0
  %1896 = vmatpush.bf16.msra.mxu0 0
  %1897 = vmatpush.bf16.msra.mxu0 0
  %1898 = vmatpush.bf16.msra.mxu0 0
  %1899 = vmatpush.bf16.msra.mxu0 0
  %1900 = vmatpush.bf16.msra.mxu0 0
  %1901 = vmatpush.bf16.msra.mxu0 0
  %1902 = vmatpush.bf16.msra.mxu0 %v1890
  %1903 = vmatpush.bf16.msra.mxu0 %v1889
  %1904 = vmatmul.bf16.gmra.mxu0 %v1894
  %v1905 = vpop.f32.mrf.mxu0
  %v1906 = vadd.f32 %v1876, %v1905
  %v1907 = vpop.f32.mrf.mxu0
  %1908 = vdwg.mxu0
  %1909 = vst [vmem:[%s12] sm:$0xff] %v1906
  // Predicated region
  $region50: #{lstm_classifier_forward.1} parent=0 // pred_check
    _
  $region51: #{lstm_classifier_forward.1} parent=0 // pred_check_branch
    %1911 = sbr.rel (0) target = $region53
  $region52: #{lstm_classifier_forward.1} parent=0 // pred_region
    _
  $region53: #{lstm_classifier_forward.1} parent=0 // pred_fallthru
    _
  // Predicated region
  $region54: #{lstm_classifier_forward.1} parent=0 // pred_check
    _
  $region55: #{lstm_classifier_forward.1} parent=0 // pred_check_branch
    %1913 = sbr.rel (0) target = $region57
  $region56: #{lstm_classifier_forward.1} parent=0 // pred_region
    _
  $region57: #{lstm_classifier_forward.1} parent=0 // pred_fallthru
    _

</llo_original>
